<compile_context>
chip_gen: v7x
topology: tpu7x:2x2x1
jax: 0.10.0
libtpu: 0.0.40
codegen_flags: <defaults>
</compile_context>

<pallas_src>
import functools

import jax
import jax.numpy as jnp
import numpy as np
from jax import lax
from jax.experimental import pallas as pl
from jax.experimental.pallas import tpu as pltpu


_MASK_NEG = -jnp.inf   # sentinel for masked (non-incident / padded) edge scores
_M_INIT = -1e30        # finite init for the running max (avoids inf-inf NaN; keeps
                       # zero-in-degree rows at exp(-inf - finite) == 0 exactly)


def edge_layer_kernel(edge_emb_t_ref, dst_emb_t_ref, dst_row_ref,
                      w_ref, gamma_ref, beta_ref, out_ref,
                      m_ref, l_ref, acc_ref):
    n_nodes = out_ref.shape[0]
    t_e = edge_emb_t_ref.shape[1]

    @pl.when(pl.program_id(0) == 0)
    def _init():
        m_ref[...] = jnp.full_like(m_ref, _M_INIT)
        l_ref[...] = jnp.zeros_like(l_ref)
        acc_ref[...] = jnp.zeros_like(acc_ref)

    e_emb_t = edge_emb_t_ref[...]        # [H, tE] edge (relation) embeddings, transposed
    d_emb_t = dst_emb_t_ref[...]         # [H, tE] destination-node embeddings, transposed
    dst_row = dst_row_ref[...]           # [1, tE] int32 destination ids (-1 => padding)

    # ---- fn.e_dot_v('emb', 'emb', 'norm'): per-edge score, edges along lanes (f32) ----
    scores = jnp.sum(e_emb_t * d_emb_t, axis=0, keepdims=True)             # [1, tE]

    # ---- incidence mask Dt[n, e] = (dst[e] == n), built in-register (no HBM one-hot) ----
    node_ids = lax.broadcasted_iota(jnp.int32, (n_nodes, t_e), 0)          # [N, tE]
    dt_mask = node_ids == dst_row                                          # [N, tE] bool

    # ---- online (flash-style) edge-softmax over edges sharing a destination node ----
    masked = jnp.where(dt_mask, scores, _MASK_NEG)                         # [N, tE]
    m_prev = m_ref[...]
    m_new = jnp.maximum(m_prev, jnp.max(masked, axis=-1, keepdims=True))   # [N, 1]
    corr = jnp.exp(m_prev - m_new)                                         # [N, 1]

    # exp(-inf - finite) == 0 for non-incident / padded columns -> Dt * p in one EUP pass.
    dtp = jnp.exp(masked - m_new)                                          # [N, tE]

    # running softmax denominator per node (kept f32 for accuracy)
    l_ref[...] = corr * l_ref[...] + jnp.sum(dtp, axis=-1, keepdims=True)  # [N, 1]

    # ---- weighted scatter-add (update_all copy_e/sum) on the MXU, bf16 operands ----
    contrib = lax.dot_general(dtp.astype(jnp.bfloat16),
                              e_emb_t.astype(jnp.bfloat16),
                              (((1,), (1,)), ((), ())),
                              preferred_element_type=jnp.float32)          # [N, H]
    acc_ref[...] = corr * acc_ref[...] + contrib
    m_ref[...] = m_new

    @pl.when(pl.program_id(0) == pl.num_programs(0) - 1)
    def _finalize():
        l = l_ref[...]
        inv_l = jnp.where(l > 0.0, 1.0 / l, 0.0)    # zero in-degree node -> neigh = 0
        neigh = acc_ref[...] * inv_l                                       # [N, H]

        # ---- neigh.mm(neigh_w) (bf16 MXU operands, f32 accumulate) ----
        h = jnp.dot(neigh.astype(jnp.bfloat16), w_ref[...].astype(jnp.bfloat16),
                    preferred_element_type=jnp.float32)

        # ---- BatchNorm1d (training-mode batch statistics, eps=1e-5) + Tanh ----
        # NOTE: n_nodes is the true node count (never padded), so the stats are exact.
        mean = jnp.mean(h, axis=0, keepdims=True)
        cen = h - mean
        var = jnp.mean(cen * cen, axis=0, keepdims=True)
        h_norm = cen * lax.rsqrt(var + jnp.float32(1e-5))
        out_ref[...] = jnp.tanh(h_norm * gamma_ref[...] + beta_ref[...])


@functools.lru_cache(maxsize=None)
def _vmem_limit_bytes():
    # v5e/v6e: 128 MiB VMEM per TensorCore; v7x: 64 MiB.  Leave headroom for
    # compiler-internal scratch (~48 MiB cap on v7x, ~96 MiB on v5e/v6e).
    try:
        cap = int(pltpu.get_tpu_info().vmem_capacity_bytes)
    except Exception:
        cap = 128 * 1024 * 1024
    return max(32 * 1024 * 1024, min((cap * 3) // 4, 100 * 1024 * 1024))


@functools.partial(jax.jit, static_argnames=("n_nodes", "edge_tile"))
def edge_layer_forward(ent_emb, rel_emb, src, dst, rel_id, neigh_w, bn_gamma, bn_beta,
                       *, n_nodes, edge_tile=512):
    del src  # only the destination side is used by e_dot_v / edge_softmax / sum-aggregation
    H = ent_emb.shape[1]
    E = dst.shape[0]
    n_tiles = max(1, -(-E // edge_tile))
    e_pad = n_tiles * edge_tile
    pad = e_pad - E
    if n_tiles > 1:
        assert edge_tile % 128 == 0, "edge_tile must be a multiple of 128 when tiling"

    # Glue: data-dependent gathers stay outside the kernel; gather directly into the
    # transposed [H, E] layout so edges land on the lane axis (no extra [E, H] pass).
    dst = dst.astype(jnp.int32)
    rel_id = rel_id.astype(jnp.int32)
    edge_emb_t = jnp.take(rel_emb.T, rel_id, axis=1)                 # [H, E]
    dst_emb_t = jnp.take(ent_emb.T, dst, axis=1)                     # [H, E]
    if pad:
        edge_emb_t = jnp.pad(edge_emb_t, ((0, 0), (0, pad)))
        dst_emb_t = jnp.pad(dst_emb_t, ((0, 0), (0, pad)))
        dst = jnp.pad(dst, (0, pad), constant_values=-1)             # -1 => inert padded edge
    dst_row = dst.reshape(1, e_pad)

    return pl.pallas_call(
        edge_layer_kernel,
        out_shape=jax.ShapeDtypeStruct((n_nodes, H), jnp.float32),
        grid_spec=pltpu.PrefetchScalarGridSpec(
            num_scalar_prefetch=0,
            grid=(n_tiles,),
            in_specs=[
                pl.BlockSpec((H, edge_tile), lambda i: (0, i)),      # edge_emb_t tile
                pl.BlockSpec((H, edge_tile), lambda i: (0, i)),      # dst_emb_t tile
                pl.BlockSpec((1, edge_tile), lambda i: (0, i)),      # dst ids tile
                pl.BlockSpec((H, H), lambda i: (0, 0)),              # neigh_w (resident)
                pl.BlockSpec((1, H), lambda i: (0, 0)),              # bn gamma
                pl.BlockSpec((1, H), lambda i: (0, 0)),              # bn beta
            ],
            out_specs=pl.BlockSpec((n_nodes, H), lambda i: (0, 0)),  # written on last tile
            scratch_shapes=[
                pltpu.VMEM((n_nodes, 1), jnp.float32),   # running per-node max
                pltpu.VMEM((n_nodes, 1), jnp.float32),   # running softmax denominator
                pltpu.VMEM((n_nodes, H), jnp.float32),   # running weighted neighbor sum
            ],
        ),
        compiler_params=pltpu.CompilerParams(
            dimension_semantics=("arbitrary",),
            vmem_limit_bytes=_vmem_limit_bytes(),
        ),
    )(edge_emb_t, dst_emb_t, dst_row, neigh_w,
      bn_gamma.reshape(1, H), bn_beta.reshape(1, H))


def reference_forward(ent_emb, rel_emb, dst, rel_id, neigh_w, gamma, beta, n_nodes):
    """Pure-JAX reference reproducing the DGL semantics, for a silent correctness check."""
    edge_emb = rel_emb[rel_id]
    scores = jnp.sum(edge_emb * ent_emb[dst], axis=-1)                      # [E]
    max_n = jax.ops.segment_max(scores, dst, num_segments=n_nodes)          # [N]
    expd = jnp.exp(scores - max_n[dst])
    den = jax.ops.segment_sum(expd, dst, num_segments=n_nodes)
    alpha = expd / den[dst]
    neigh = jax.ops.segment_sum(edge_emb * alpha[:, None], dst, num_segments=n_nodes)
    h = jnp.dot(neigh, neigh_w, precision=lax.Precision.HIGHEST)
    mean = h.mean(0, keepdims=True)
    var = ((h - mean) ** 2).mean(0, keepdims=True)
    return jnp.tanh((h - mean) / jnp.sqrt(var + 1e-5) * gamma + beta)


if __name__ == "__main__":
    H = 128          # module default h_dim (lane-dense)
    N_NODES = 64     # number of graph nodes (== ent_emb.shape[0]); module uses 1559
    N_EDGES = 600
    N_REL = 86       # fixed by the module; rel_emb must have 2*n_rel rows
    EDGE_TILE = 256  # small-shape test tile -> 3 grid steps exercise the online softmax

    key = jax.random.PRNGKey(0)
    k_ent, k_rel, k_w, k_src, k_dst, k_rid = jax.random.split(key, 6)

    ent_emb = jax.random.normal(k_ent, (N_NODES, H), dtype=jnp.float32)
    rel_emb = jax.random.normal(k_rel, (2 * N_REL, H), dtype=jnp.float32)

    # Deterministic parameter init (synthetic): xavier_normal_ for neigh_w, BN affine = (1, 0).
    xavier_std = float(np.sqrt(2.0 / (H + H)))
    neigh_w = xavier_std * jax.random.normal(k_w, (H, H), dtype=jnp.float32)
    bn_gamma = jnp.ones((H,), dtype=jnp.float32)
    bn_beta = jnp.zeros((H,), dtype=jnp.float32)

    # Synthetic graph edges (src, dst, rel_id); last few nodes get zero in-degree on purpose.
    src = jax.random.randint(k_src, (N_EDGES,), 0, N_NODES)
    dst = jax.random.randint(k_dst, (N_EDGES,), 0, N_NODES - 4)
    rel_id = jax.random.randint(k_rid, (N_EDGES,), 0, 2 * N_REL)

    out = edge_layer_forward(ent_emb, rel_emb, src, dst, rel_id,
                             neigh_w, bn_gamma, bn_beta,
                             n_nodes=N_NODES, edge_tile=EDGE_TILE)
    out = jax.block_until_ready(out)

    ref = reference_forward(ent_emb, rel_emb, dst, rel_id, neigh_w,
                            bn_gamma[None, :], bn_beta[None, :], N_NODES)
    # bf16 MXU operands (f32 accumulation) -> relaxed tolerance.
    np.testing.assert_allclose(np.asarray(out), np.asarray(ref), rtol=2e-2, atol=2e-2)

    print("KERNEL_OK")
</pallas_src>

<mosaic_0001>
module attributes {stable_mosaic.version = 11 : i64} {
  func.func @edge_layer_kernel(%arg0: i32, %arg1: memref<128x256xf32, #tpu.memory_space<vmem>>, %arg2: memref<128x256xf32, #tpu.memory_space<vmem>>, %arg3: memref<1x256xi32, #tpu.memory_space<vmem>>, %arg4: memref<128x128xf32, #tpu.memory_space<vmem>>, %arg5: memref<1x128xf32, #tpu.memory_space<vmem>>, %arg6: memref<1x128xf32, #tpu.memory_space<vmem>>, %arg7: memref<64x128xf32, #tpu.memory_space<vmem>>, %arg8: memref<64x1xf32, #tpu.memory_space<vmem>>, %arg9: memref<64x1xf32, #tpu.memory_space<vmem>>, %arg10: memref<64x128xf32, #tpu.memory_space<vmem>>) attributes {dimension_semantics = [#tpu.dimension_semantics<arbitrary>], iteration_bounds = array<i64: 3>, scalar_prefetch = 0 : i64, scratch_operands = 3 : i64, tpu.core_type = #tpu.core_type<tc>, window_params = [{transform_indices = @transform_0, window_bounds = array<i64: 128, 256>}, {transform_indices = @transform_1, window_bounds = array<i64: 128, 256>}, {transform_indices = @transform_2, window_bounds = array<i64: 1, 256>}, {pipeline_mode = #tpu.pipeline_mode<synchronous>, transform_indices = @transform_3, window_bounds = array<i64: 128, 128>}, {pipeline_mode = #tpu.pipeline_mode<synchronous>, transform_indices = @transform_4, window_bounds = array<i64: 1, 128>}, {pipeline_mode = #tpu.pipeline_mode<synchronous>, transform_indices = @transform_5, window_bounds = array<i64: 1, 128>}, {pipeline_mode = #tpu.pipeline_mode<synchronous>, transform_indices = @transform_6, window_bounds = array<i64: 64, 128>}]} {
    %c0_i32 = arith.constant 0 : i32
    %0 = arith.cmpi eq, %arg0, %c0_i32 : i32
    %1 = arith.extui %0 : i1 to i32
    %c0_i32_0 = arith.constant 0 : i32
    %2 = arith.cmpi ne, %1, %c0_i32_0 : i32
    scf.if %2 {
      %cst_23 = arith.constant -1.000000e+30 : f32
      %43 = vector.broadcast %cst_23 : f32 to vector<64x1xf32>
      %c0_24 = arith.constant 0 : index
      %c0_25 = arith.constant 0 : index
      %44 = vector.load %arg8[%c0_24, %c0_25] : memref<64x1xf32, #tpu.memory_space<vmem>>, vector<64x1xf32>
      tpu.vector_store %arg8[%c0_24, %c0_25], %43 {strides = array<i32>} : memref<64x1xf32, #tpu.memory_space<vmem>>, vector<64x1xf32>,
      %cst_26 = arith.constant 0.000000e+00 : f32
      %45 = vector.broadcast %cst_26 : f32 to vector<64x1xf32>
      %c0_27 = arith.constant 0 : index
      %c0_28 = arith.constant 0 : index
      %46 = vector.load %arg9[%c0_27, %c0_28] : memref<64x1xf32, #tpu.memory_space<vmem>>, vector<64x1xf32>
      tpu.vector_store %arg9[%c0_27, %c0_28], %45 {strides = array<i32>} : memref<64x1xf32, #tpu.memory_space<vmem>>, vector<64x1xf32>,
      %cst_29 = arith.constant 0.000000e+00 : f32
      %47 = vector.broadcast %cst_29 : f32 to vector<64x128xf32>
      %c0_30 = arith.constant 0 : index
      %c0_31 = arith.constant 0 : index
      %48 = vector.load %arg10[%c0_30, %c0_31] : memref<64x128xf32, #tpu.memory_space<vmem>>, vector<64x128xf32>
      tpu.vector_store %arg10[%c0_30, %c0_31], %47 {strides = array<i32>} : memref<64x128xf32, #tpu.memory_space<vmem>>, vector<64x128xf32>,
    } else {
    }
    %c0 = arith.constant 0 : index
    %c0_1 = arith.constant 0 : index
    %3 = vector.load %arg1[%c0, %c0_1] : memref<128x256xf32, #tpu.memory_space<vmem>>, vector<128x256xf32>
    %c0_2 = arith.constant 0 : index
    %c0_3 = arith.constant 0 : index
    %4 = vector.load %arg2[%c0_2, %c0_3] : memref<128x256xf32, #tpu.memory_space<vmem>>, vector<128x256xf32>
    %c0_4 = arith.constant 0 : index
    %c0_5 = arith.constant 0 : index
    %5 = vector.load %arg3[%c0_4, %c0_5] : memref<1x256xi32, #tpu.memory_space<vmem>>, vector<1x256xi32>
    %6 = arith.mulf %3, %4 : vector<128x256xf32>
    %cst = arith.constant dense<0.000000e+00> : vector<256xf32>
    %7 = vector.multi_reduction <add>, %6, %cst [0] : vector<128x256xf32> to vector<256xf32>
    %8 = vector.shape_cast %7 : vector<256xf32> to vector<1x256xf32>
    %9 = tpu.iota {dimensions = array<i32: 0>} : vector<64x256xi32>
    %10 = vector.broadcast %5 : vector<1x256xi32> to vector<64x256xi32>
    %11 = arith.cmpi eq, %9, %10 : vector<64x256xi32>
    %cst_6 = arith.constant 0xFF800000 : f32
    %12 = vector.shape_cast %8 : vector<1x256xf32> to vector<1x256xf32>
    %13 = vector.broadcast %12 : vector<1x256xf32> to vector<64x256xf32>
    %14 = vector.broadcast %cst_6 : f32 to vector<64x256xf32>
    %15 = arith.select %11, %13, %14 : vector<64x256xi1>, vector<64x256xf32>
    %c0_7 = arith.constant 0 : index
    %c0_8 = arith.constant 0 : index
    %16 = vector.load %arg8[%c0_7, %c0_8] : memref<64x1xf32, #tpu.memory_space<vmem>>, vector<64x1xf32>
    %cst_9 = arith.constant dense<0xFF800000> : vector<64xf32>
    %17 = vector.multi_reduction <maximumf>, %15, %cst_9 [1] : vector<64x256xf32> to vector<64xf32>
    %18 = vector.shape_cast %17 : vector<64xf32> to vector<64x1xf32>
    %19 = arith.maximumf %16, %18 : vector<64x1xf32>
    %20 = arith.subf %16, %19 : vector<64x1xf32>
    %21 = math.exp %20 : vector<64x1xf32>
    %22 = vector.broadcast %19 : vector<64x1xf32> to vector<64x256xf32>
    %23 = arith.subf %15, %22 : vector<64x256xf32>
    %24 = math.exp %23 : vector<64x256xf32>
    %c0_10 = arith.constant 0 : index
    %c0_11 = arith.constant 0 : index
    %25 = vector.load %arg9[%c0_10, %c0_11] : memref<64x1xf32, #tpu.memory_space<vmem>>, vector<64x1xf32>
    %26 = arith.mulf %21, %25 : vector<64x1xf32>
    %cst_12 = arith.constant dense<0.000000e+00> : vector<64xf32>
    %27 = vector.multi_reduction <add>, %24, %cst_12 [1] : vector<64x256xf32> to vector<64xf32>
    %28 = vector.shape_cast %27 : vector<64xf32> to vector<64x1xf32>
    %29 = arith.addf %26, %28 : vector<64x1xf32>
    %c0_13 = arith.constant 0 : index
    %c0_14 = arith.constant 0 : index
    %30 = vector.load %arg9[%c0_13, %c0_14] : memref<64x1xf32, #tpu.memory_space<vmem>>, vector<64x1xf32>
    tpu.vector_store %arg9[%c0_13, %c0_14], %29 {strides = array<i32>} : memref<64x1xf32, #tpu.memory_space<vmem>>, vector<64x1xf32>,
    %31 = arith.truncf %24 : vector<64x256xf32> to vector<64x256xbf16>
    %32 = arith.truncf %3 : vector<128x256xf32> to vector<128x256xbf16>
    %cst_15 = arith.constant dense<0.000000e+00> : vector<64x128xf32>
    %33 = tpu.matmul %31, %32, %cst_15 {dimension_numbers = #tpu.dot_dimension_numbers<[1], [1], [0], [0], [0, 0, 1, 0], [], []>} : vector<64x256xbf16>, vector<128x256xbf16>, vector<64x128xf32> -> vector<64x128xf32>
    %c0_16 = arith.constant 0 : index
    %c0_17 = arith.constant 0 : index
    %34 = vector.load %arg10[%c0_16, %c0_17] : memref<64x128xf32, #tpu.memory_space<vmem>>, vector<64x128xf32>
    %35 = vector.broadcast %21 : vector<64x1xf32> to vector<64x128xf32>
    %36 = arith.mulf %35, %34 : vector<64x128xf32>
    %37 = arith.addf %36, %33 : vector<64x128xf32>
    %c0_18 = arith.constant 0 : index
    %c0_19 = arith.constant 0 : index
    %38 = vector.load %arg10[%c0_18, %c0_19] : memref<64x128xf32, #tpu.memory_space<vmem>>, vector<64x128xf32>
    tpu.vector_store %arg10[%c0_18, %c0_19], %37 {strides = array<i32>} : memref<64x128xf32, #tpu.memory_space<vmem>>, vector<64x128xf32>,
    %c0_20 = arith.constant 0 : index
    %c0_21 = arith.constant 0 : index
    %39 = vector.load %arg8[%c0_20, %c0_21] : memref<64x1xf32, #tpu.memory_space<vmem>>, vector<64x1xf32>
    tpu.vector_store %arg8[%c0_20, %c0_21], %19 {strides = array<i32>} : memref<64x1xf32, #tpu.memory_space<vmem>>, vector<64x1xf32>,
    %c2_i32 = arith.constant 2 : i32
    %40 = arith.cmpi eq, %arg0, %c2_i32 : i32
    %41 = arith.extui %40 : i1 to i32
    %c0_i32_22 = arith.constant 0 : i32
    %42 = arith.cmpi ne, %41, %c0_i32_22 : i32
    scf.if %42 {
      %c0_23 = arith.constant 0 : index
      %c0_24 = arith.constant 0 : index
      %43 = vector.load %arg9[%c0_23, %c0_24] : memref<64x1xf32, #tpu.memory_space<vmem>>, vector<64x1xf32>
      %cst_25 = arith.constant 0.000000e+00 : f32
      %44 = vector.broadcast %cst_25 : f32 to vector<64x1xf32>
      %45 = arith.cmpf ogt, %43, %44 : vector<64x1xf32>
      %cst_26 = arith.constant 1.000000e+00 : f32
      %46 = vector.broadcast %cst_26 : f32 to vector<64x1xf32>
      %47 = arith.divf %46, %43 : vector<64x1xf32>
      %cst_27 = arith.constant 0.000000e+00 : f32
      %48 = vector.broadcast %cst_27 : f32 to vector<64x1xf32>
      %49 = arith.select %45, %47, %48 : vector<64x1xi1>, vector<64x1xf32>
      %c0_28 = arith.constant 0 : index
      %c0_29 = arith.constant 0 : index
      %50 = vector.load %arg10[%c0_28, %c0_29] : memref<64x128xf32, #tpu.memory_space<vmem>>, vector<64x128xf32>
      %51 = vector.broadcast %49 : vector<64x1xf32> to vector<64x128xf32>
      %52 = arith.mulf %50, %51 : vector<64x128xf32>
      %53 = arith.truncf %52 : vector<64x128xf32> to vector<64x128xbf16>
      %c0_30 = arith.constant 0 : index
      %c0_31 = arith.constant 0 : index
      %54 = vector.load %arg4[%c0_30, %c0_31] : memref<128x128xf32, #tpu.memory_space<vmem>>, vector<128x128xf32>
      %55 = arith.truncf %54 : vector<128x128xf32> to vector<128x128xbf16>
      %cst_32 = arith.constant dense<0.000000e+00> : vector<64x128xf32>
      %56 = tpu.matmul %53, %55, %cst_32 {dimension_numbers = #tpu.dot_dimension_numbers<[1], [0], [0], [1], [0, 0, 1, 1], [], []>} : vector<64x128xbf16>, vector<128x128xbf16>, vector<64x128xf32> -> vector<64x128xf32>
      %cst_33 = arith.constant dense<0.000000e+00> : vector<128xf32>
      %57 = vector.multi_reduction <add>, %56, %cst_33 [0] : vector<64x128xf32> to vector<128xf32>
      %58 = vector.shape_cast %57 : vector<128xf32> to vector<1x128xf32>
      %cst_34 = arith.constant 6.400000e+01 : f32
      %59 = vector.broadcast %cst_34 : f32 to vector<1x128xf32>
      %60 = arith.divf %58, %59 : vector<1x128xf32>
      %61 = vector.broadcast %60 : vector<1x128xf32> to vector<64x128xf32>
      %62 = arith.subf %56, %61 : vector<64x128xf32>
      %63 = arith.mulf %62, %62 : vector<64x128xf32>
      %cst_35 = arith.constant dense<0.000000e+00> : vector<128xf32>
      %64 = vector.multi_reduction <add>, %63, %cst_35 [0] : vector<64x128xf32> to vector<128xf32>
      %65 = vector.shape_cast %64 : vector<128xf32> to vector<1x128xf32>
      %cst_36 = arith.constant 6.400000e+01 : f32
      %66 = vector.broadcast %cst_36 : f32 to vector<1x128xf32>
      %67 = arith.divf %65, %66 : vector<1x128xf32>
      %cst_37 = arith.constant 9.99999974E-6 : f32
      %68 = vector.broadcast %cst_37 : f32 to vector<1x128xf32>
      %69 = arith.addf %67, %68 : vector<1x128xf32>
      %70 = math.rsqrt %69 : vector<1x128xf32>
      %71 = vector.broadcast %70 : vector<1x128xf32> to vector<64x128xf32>
      %72 = arith.mulf %62, %71 : vector<64x128xf32>
      %c0_38 = arith.constant 0 : index
      %c0_39 = arith.constant 0 : index
      %73 = vector.load %arg5[%c0_38, %c0_39] : memref<1x128xf32, #tpu.memory_space<vmem>>, vector<1x128xf32>
      %74 = vector.broadcast %73 : vector<1x128xf32> to vector<64x128xf32>
      %75 = arith.mulf %72, %74 : vector<64x128xf32>
      %c0_40 = arith.constant 0 : index
      %c0_41 = arith.constant 0 : index
      %76 = vector.load %arg6[%c0_40, %c0_41] : memref<1x128xf32, #tpu.memory_space<vmem>>, vector<1x128xf32>
      %77 = vector.broadcast %76 : vector<1x128xf32> to vector<64x128xf32>
      %78 = arith.addf %75, %77 : vector<64x128xf32>
      %79 = math.tanh %78 : vector<64x128xf32>
      %c0_42 = arith.constant 0 : index
      %c0_43 = arith.constant 0 : index
      %80 = vector.load %arg7[%c0_42, %c0_43] : memref<64x128xf32, #tpu.memory_space<vmem>>, vector<64x128xf32>
      tpu.vector_store %arg7[%c0_42, %c0_43], %79 {strides = array<i32>} : memref<64x128xf32, #tpu.memory_space<vmem>>, vector<64x128xf32>,
    } else {
    }
    return
  }
  func.func @transform_0(%arg0: i32) -> (i32, i32) {
    %c0_i32 = arith.constant 0 : i32
    %c0_i32_0 = arith.constant 0 : i32
    return %c0_i32, %arg0 : i32, i32
  }
  func.func @transform_1(%arg0: i32) -> (i32, i32) {
    %c0_i32 = arith.constant 0 : i32
    %c0_i32_0 = arith.constant 0 : i32
    return %c0_i32, %arg0 : i32, i32
  }
  func.func @transform_2(%arg0: i32) -> (i32, i32) {
    %c0_i32 = arith.constant 0 : i32
    %c0_i32_0 = arith.constant 0 : i32
    return %c0_i32, %arg0 : i32, i32
  }
  func.func @transform_3(%arg0: i32) -> (i32, i32) {
    %c0_i32 = arith.constant 0 : i32
    %c0_i32_0 = arith.constant 0 : i32
    %c0_i32_1 = arith.constant 0 : i32
    return %c0_i32, %c0_i32_0 : i32, i32
  }
  func.func @transform_4(%arg0: i32) -> (i32, i32) {
    %c0_i32 = arith.constant 0 : i32
    %c0_i32_0 = arith.constant 0 : i32
    %c0_i32_1 = arith.constant 0 : i32
    return %c0_i32, %c0_i32_0 : i32, i32
  }
  func.func @transform_5(%arg0: i32) -> (i32, i32) {
    %c0_i32 = arith.constant 0 : i32
    %c0_i32_0 = arith.constant 0 : i32
    %c0_i32_1 = arith.constant 0 : i32
    return %c0_i32, %c0_i32_0 : i32, i32
  }
  func.func @transform_6(%arg0: i32) -> (i32, i32) {
    %c0_i32 = arith.constant 0 : i32
    %c0_i32_0 = arith.constant 0 : i32
    %c0_i32_1 = arith.constant 0 : i32
    return %c0_i32, %c0_i32_0 : i32, i32
  }
}

</mosaic_0001>

<llo_original>
// kernel: edge_layer_forward.1
$region0: #{edge_layer_forward.1}
  #allocation0 [shape = 'u32[]', space=smem, size = 0x4, offset = 0x4, fixed_abs, tag = 'smem constant byte address 0x4 - core index']
  #allocation1 [shape = 'u32[144,128]{1,0:T(1,128)}', space=vmem, size = 0x12000, scoped, tag = 'internal scratch']
  #allocation2 [shape = 'f32[64,1]{1,0:T(8,128)}', space=vmem, size = 0x8000, scoped, tag = 'scratch operand']
  #allocation3 [shape = 'f32[64,1]{1,0:T(8,128)}', space=vmem, size = 0x8000, scoped, tag = 'scratch operand']
  #allocation4 [shape = 'f32[64,128]{1,0:T(8,128)}', space=vmem, size = 0x8000, scoped, tag = 'scratch operand']
  %s0 = inlined_call_operand.hbm [shape: f32[128,768], index: 0, kind: input, shape index: {}]
  %s1 = inlined_call_operand.hbm [shape: f32[128,768], index: 1, kind: input, shape index: {}]
  %s2 = inlined_call_operand.hbm [shape: s32[1,768], index: 2, kind: input, shape index: {}]
  %s3 = inlined_call_operand.hbm [shape: f32[128,128], index: 3, kind: input, shape index: {}]
  %s4 = inlined_call_operand.hbm [shape: f32[1,128], index: 4, kind: input, shape index: {}]
  %s5 = inlined_call_operand.hbm [shape: f32[1,128], index: 5, kind: input, shape index: {}]
  %s6 = inlined_call_operand.hbm [shape: f32[64,128], index: 6, kind: output, shape index: {}]
  %s7 = sld [smem:[#allocation0]]
  $region89: #{edge_layer_forward.1} parent=0
    _
  %s9 = ssub.s32 1, %s7
  %s10 = scalar_select 0, %s9, %s7
  $region1: #{edge_layer_forward.1} parent=0
    #allocation5 [shape = 'u8[262144]{0}', space=vmem, size = 0x40000, scoped, tag = 'input window, operand 0']
    #allocation6 [shape = 's32[2]{0}', space=sflag, size = 0x8, scoped, tag = 'scoped memory for edge_layer_forward.1']
    #allocation7 [shape = 's32[2]{0}', space=sflag, size = 0x8, scoped, tag = 'scoped memory for edge_layer_forward.1']
    #allocation8 [shape = 'u8[262144]{0}', space=vmem, size = 0x40000, scoped, tag = 'input window, operand 1']
    #allocation9 [shape = 's32[2]{0}', space=sflag, size = 0x8, scoped, tag = 'scoped memory for edge_layer_forward.1']
    #allocation10 [shape = 'u8[2048]{0}', space=vmem, size = 0x800, scoped, tag = 'input window, operand 2']
    #allocation11 [shape = 'u8[65536]{0}', space=vmem, size = 0x10000, scoped, tag = 'input window, operand 3, single buffered']
    #allocation12 [shape = 's32[1]{0}', space=sflag, size = 0x4, scoped, tag = 'scoped memory for edge_layer_forward.1']
    #allocation13 [shape = 'u8[512]{0}', space=vmem, size = 0x400, scoped, tag = 'input window, operand 4, single buffered']
    #allocation14 [shape = 'u8[512]{0}', space=vmem, size = 0x400, scoped, tag = 'input window, operand 5, single buffered']
    #allocation15 [shape = 's32[1]{0}', space=sflag, size = 0x4, scoped, tag = 'scoped memory for edge_layer_forward.1']
    #allocation16 [shape = 'u8[32768]{0}', space=vmem, size = 0x8000, scoped, tag = 'output window, operand 0, single buffered']
    %11 = vsyncpa [#allocation6], 0
    %s12 = scalar_lea.sflag [#allocation6], 1
    %13 = vsyncpa %s12, 0
    %14 = vsyncpa [#allocation9], 0
    %s15 = scalar_lea.sflag [#allocation9], 1
    %16 = vsyncpa %s15, 0
    %17 = vsyncpa [#allocation12], 0
    %18 = vsyncpa [#allocation15], 0
    %19 = vsyncpa [#allocation7], 0
    loop: start=0, step=1, limit=5
    $region2: #{edge_layer_forward.1} parent=1 // loop_pre_header
      _
    $region3: #{edge_layer_forward.1} parent=1 // loop_header
      %s21 = sphi 0, %s25
      %p22 = scmp.ge.s32.totalorder %s21, 5
      %s31 = sphi 0, %s33
      %s34 = sphi 0, %s31
      %s35 = sphi 0, %s34
      %s51 = sphi 0, %s35
      %s57 = sphi 0, %s59
      %s60 = sphi 0, %s57
      %s61 = sphi 0, %s60
      %s77 = sphi 0, %s61
      %s83 = sphi 0, %s85
      %s86 = sphi 0, %s83
      %s87 = sphi 0, %s86
      %s103 = sphi 0, %s87
      %s107 = sphi 0, %s107
      %s109 = sphi 0, %s107
      %s110 = sphi 0, %s109
      %s124 = sphi 0, %s110
      %s128 = sphi 0, %s128
      %s130 = sphi 0, %s128
      %s131 = sphi 0, %s130
      %s145 = sphi 0, %s131
      %s149 = sphi 0, %s149
      %s151 = sphi 0, %s149
      %s152 = sphi 0, %s151
      %s166 = sphi 0, %s152
      %s170 = sphi 0, %s170
      %s172 = sphi 0, %s170
      %s173 = sphi 0, %s172
      %s187 = sphi 0, %s173
    $region4: #{edge_layer_forward.1} parent=1 // loop_header_branch
      %24 = sbr.rel (%p22) target = $region8
    $region5: #{edge_layer_forward.1} parent=1 // loop_body
      %s26 = ssub.s32 %s21, 1
      %s27 = ssub.s32 %s21, 2
      %s28 = sadd.s32 %s21, 1
      %s29 = ssub.s32 %s21, %s28
      %p30 = scmp.eq.s32.totalorder %s29, 0
      %s32 = sadd.s32 %s31, 1
      %s33 = scalar_select %p30, %s31, %s32
      %p36 = pneg %p30
      %p37 = scmp.eq.s32.totalorder %s21, 2
      %p38 = por %p36, %p37
      %p39 = scmp.ne.s32.totalorder %s31, %s34
      %p40 = scmp.eq.s32.totalorder %s21, 0
      %p41 = por %p39, %p40
      %p42 = scmp.ne.s32.totalorder %s31, %s34
      %p43 = scmp.eq.s32.totalorder %s26, 2
      %p44 = por %p42, %p43
      %p45 = scmp.ne.s32.totalorder %s34, %s35
      %p46 = scmp.eq.s32.totalorder %s26, 0
      %p47 = por %p45, %p46
      %p48 = scmp.ne.s32.totalorder %s34, %s35
      %p49 = scmp.eq.s32.totalorder %s27, 2
      %p50 = por %p48, %p49
      %p52 = scmp.ne.s32.totalorder %s35, %s51
      %p53 = scmp.eq.s32.totalorder %s27, 0
      %p54 = por %p52, %p53
      %s55 = ssub.s32 %s21, %s28
      %p56 = scmp.eq.s32.totalorder %s55, 0
      %s58 = sadd.s32 %s57, 1
      %s59 = scalar_select %p56, %s57, %s58
      %p62 = pneg %p56
      %p63 = scmp.eq.s32.totalorder %s21, 2
      %p64 = por %p62, %p63
      %p65 = scmp.ne.s32.totalorder %s57, %s60
      %p66 = scmp.eq.s32.totalorder %s21, 0
      %p67 = por %p65, %p66
      %p68 = scmp.ne.s32.totalorder %s57, %s60
      %p69 = scmp.eq.s32.totalorder %s26, 2
      %p70 = por %p68, %p69
      %p71 = scmp.ne.s32.totalorder %s60, %s61
      %p72 = scmp.eq.s32.totalorder %s26, 0
      %p73 = por %p71, %p72
      %p74 = scmp.ne.s32.totalorder %s60, %s61
      %p75 = scmp.eq.s32.totalorder %s27, 2
      %p76 = por %p74, %p75
      %p78 = scmp.ne.s32.totalorder %s61, %s77
      %p79 = scmp.eq.s32.totalorder %s27, 0
      %p80 = por %p78, %p79
      %s81 = ssub.s32 %s21, %s28
      %p82 = scmp.eq.s32.totalorder %s81, 0
      %s84 = sadd.s32 %s83, 1
      %s85 = scalar_select %p82, %s83, %s84
      %p88 = pneg %p82
      %p89 = scmp.eq.s32.totalorder %s21, 2
      %p90 = por %p88, %p89
      %p91 = scmp.ne.s32.totalorder %s83, %s86
      %p92 = scmp.eq.s32.totalorder %s21, 0
      %p93 = por %p91, %p92
      %p94 = scmp.ne.s32.totalorder %s83, %s86
      %p95 = scmp.eq.s32.totalorder %s26, 2
      %p96 = por %p94, %p95
      %p97 = scmp.ne.s32.totalorder %s86, %s87
      %p98 = scmp.eq.s32.totalorder %s26, 0
      %p99 = por %p97, %p98
      %p100 = scmp.ne.s32.totalorder %s86, %s87
      %p101 = scmp.eq.s32.totalorder %s27, 2
      %p102 = por %p100, %p101
      %p104 = scmp.ne.s32.totalorder %s87, %s103
      %p105 = scmp.eq.s32.totalorder %s27, 0
      %p106 = por %p104, %p105
      %s108 = sadd.s32 %s107, 1
      %p111 = scmp.eq.s32.totalorder %s21, 2
      %p112 = scmp.ne.s32.totalorder %s107, %s109
      %p113 = scmp.eq.s32.totalorder %s21, 0
      %p114 = por %p112, %p113
      %p115 = scmp.ne.s32.totalorder %s107, %s109
      %p116 = scmp.eq.s32.totalorder %s26, 2
      %p117 = por %p115, %p116
      %p118 = scmp.ne.s32.totalorder %s109, %s110
      %p119 = scmp.eq.s32.totalorder %s26, 0
      %p120 = por %p118, %p119
      %p121 = scmp.ne.s32.totalorder %s109, %s110
      %p122 = scmp.eq.s32.totalorder %s27, 2
      %p123 = por %p121, %p122
      %p125 = scmp.ne.s32.totalorder %s110, %s124
      %p126 = scmp.eq.s32.totalorder %s27, 0
      %p127 = por %p125, %p126
      %s129 = sadd.s32 %s128, 1
      %p132 = scmp.eq.s32.totalorder %s21, 2
      %p133 = scmp.ne.s32.totalorder %s128, %s130
      %p134 = scmp.eq.s32.totalorder %s21, 0
      %p135 = por %p133, %p134
      %p136 = scmp.ne.s32.totalorder %s128, %s130
      %p137 = scmp.eq.s32.totalorder %s26, 2
      %p138 = por %p136, %p137
      %p139 = scmp.ne.s32.totalorder %s130, %s131
      %p140 = scmp.eq.s32.totalorder %s26, 0
      %p141 = por %p139, %p140
      %p142 = scmp.ne.s32.totalorder %s130, %s131
      %p143 = scmp.eq.s32.totalorder %s27, 2
      %p144 = por %p142, %p143
      %p146 = scmp.ne.s32.totalorder %s131, %s145
      %p147 = scmp.eq.s32.totalorder %s27, 0
      %p148 = por %p146, %p147
      %s150 = sadd.s32 %s149, 1
      %p153 = scmp.eq.s32.totalorder %s21, 2
      %p154 = scmp.ne.s32.totalorder %s149, %s151
      %p155 = scmp.eq.s32.totalorder %s21, 0
      %p156 = por %p154, %p155
      %p157 = scmp.ne.s32.totalorder %s149, %s151
      %p158 = scmp.eq.s32.totalorder %s26, 2
      %p159 = por %p157, %p158
      %p160 = scmp.ne.s32.totalorder %s151, %s152
      %p161 = scmp.eq.s32.totalorder %s26, 0
      %p162 = por %p160, %p161
      %p163 = scmp.ne.s32.totalorder %s151, %s152
      %p164 = scmp.eq.s32.totalorder %s27, 2
      %p165 = por %p163, %p164
      %p167 = scmp.ne.s32.totalorder %s152, %s166
      %p168 = scmp.eq.s32.totalorder %s27, 0
      %p169 = por %p167, %p168
      %s171 = sadd.s32 %s170, 1
      %p174 = scmp.eq.s32.totalorder %s21, 2
      %p175 = scmp.ne.s32.totalorder %s170, %s172
      %p176 = scmp.eq.s32.totalorder %s21, 0
      %p177 = por %p175, %p176
      %p178 = scmp.ne.s32.totalorder %s170, %s172
      %p179 = scmp.eq.s32.totalorder %s26, 2
      %p180 = por %p178, %p179
      %p181 = scmp.ne.s32.totalorder %s172, %s173
      %p182 = scmp.eq.s32.totalorder %s26, 0
      %p183 = por %p181, %p182
      %p184 = scmp.ne.s32.totalorder %s172, %s173
      %p185 = scmp.eq.s32.totalorder %s27, 2
      %p186 = por %p184, %p185
      %p188 = scmp.ne.s32.totalorder %s173, %s187
      %p189 = scmp.eq.s32.totalorder %s27, 0
      %p190 = por %p188, %p189
      %p191 = scmp.le.s32.totalorder 1, %s21
      %p192 = scmp.lt.s32.totalorder %s21, 4
      %p193 = pnand %p191, %p192
      %p194 = pneg %p193
      // Predicated region
      $region9: #{edge_layer_forward.1} parent=5 // pred_check
        _
      $region10: #{edge_layer_forward.1} parent=5 // pred_check_branch
        %196 = sbr.rel (%p193) target = $region12
      $region11: #{edge_layer_forward.1} parent=5 // pred_region
        %s197 = ssub.s32 %s21, 1
        // Predicated region
        $region13: #{edge_layer_forward.1} parent=11 // pred_check
          %p198 = pneg %p120
        $region14: #{edge_layer_forward.1} parent=11 // pred_check_branch
          %200 = sbr.rel (%p198) target = $region16
        $region15: #{edge_layer_forward.1} parent=11 // pred_region
          %s202 = ssub.s32 2048, 2048
          %203 = vsyncadd [#allocation12], %s202
          %s204 = sshll.u32 [#allocation11], 4
          %s205 = int_to_ptr.vmem [resolvable:$true] %s204
          %210 = dma.hbm_to_vmem [thread:$0]  %s3, 2048, %s205, [#allocation12], 128, 128, 8
        $region16: #{edge_layer_forward.1} parent=11 // pred_fallthru
          _
        // Predicated region
        $region17: #{edge_layer_forward.1} parent=11 // pred_check
          %p211 = pneg %p141
        $region18: #{edge_layer_forward.1} parent=11 // pred_check_branch
          %213 = sbr.rel (%p211) target = $region20
        $region19: #{edge_layer_forward.1} parent=11 // pred_region
          %s215 = ssub.s32 16, 16
          %216 = vsyncadd [#allocation12], %s215
          %s218 = sshll.u32 [#allocation13], 4
          %s219 = int_to_ptr.vmem [resolvable:$true] %s218
          %221 = dma.hbm_to_vmem [thread:$0]  %s4, 16, %s219, [#allocation12]
        $region20: #{edge_layer_forward.1} parent=11 // pred_fallthru
          _
        // Predicated region
        $region21: #{edge_layer_forward.1} parent=11 // pred_check
          %p222 = pneg %p162
        $region22: #{edge_layer_forward.1} parent=11 // pred_check_branch
          %224 = sbr.rel (%p222) target = $region24
        $region23: #{edge_layer_forward.1} parent=11 // pred_region
          %s226 = ssub.s32 16, 16
          %227 = vsyncadd [#allocation15], %s226
          %s229 = sshll.u32 [#allocation14], 4
          %s230 = int_to_ptr.vmem [resolvable:$true] %s229
          %232 = dma.hbm_to_vmem [thread:$0]  %s5, 16, %s230, [#allocation15]
        $region24: #{edge_layer_forward.1} parent=11 // pred_fallthru
          _
      $region12: #{edge_layer_forward.1} parent=5 // pred_fallthru
        _
      %p233 = scmp.lt.s32.totalorder %s21, 3
      // Predicated region
      $region25: #{edge_layer_forward.1} parent=5 // pred_check
        %p234 = pneg %p233
      $region26: #{edge_layer_forward.1} parent=5 // pred_check_branch
        %236 = sbr.rel (%p234) target = $region28
      $region27: #{edge_layer_forward.1} parent=5 // pred_region
        // Predicated region
        $region29: #{edge_layer_forward.1} parent=27 // pred_check
          %p237 = pneg %p41
        $region30: #{edge_layer_forward.1} parent=27 // pred_check_branch
          %239 = sbr.rel (%p237) target = $region32
        $region31: #{edge_layer_forward.1} parent=27 // pred_region
          %s240 = sand.u32 %s31, 1
          %s241 = scalar_lea.sflag [#allocation6], %s240
          %s242 = sand.u32 %s31, 1
          %s243 = smul.addr %s242, 256
          %s244 = scalar_lea.vmem [#allocation5], %s243
          %s245 = smul.u32 2, %s21
          %s247 = ssub.s32 4096, 4096
          %248 = vsyncadd %s241, %s247
          %s249 = smul.addr %s245, 128
          %s250 = scalar_lea.hbm %s0, %s249
          %s251 = sshll.u32 %s244, 4
          %s252 = int_to_ptr.vmem [resolvable:$true] %s251
          %257 = dma.hbm_to_vmem [thread:$0]  %s250, 4096, %s252, %s241, 768, 256, 16
        $region32: #{edge_layer_forward.1} parent=27 // pred_fallthru
          _
        // Predicated region
        $region33: #{edge_layer_forward.1} parent=27 // pred_check
          %p258 = pneg %p67
        $region34: #{edge_layer_forward.1} parent=27 // pred_check_branch
          %260 = sbr.rel (%p258) target = $region36
        $region35: #{edge_layer_forward.1} parent=27 // pred_region
          %s261 = sand.u32 %s21, 1
          %s262 = scalar_lea.sflag [#allocation9], %s261
          %s263 = sand.u32 %s57, 1
          %s264 = smul.addr %s263, 256
          %s265 = scalar_lea.vmem [#allocation8], %s264
          %s266 = smul.u32 2, %s21
          %s268 = ssub.s32 4096, 4096
          %269 = vsyncadd %s262, %s268
          %s270 = smul.addr %s266, 128
          %s271 = scalar_lea.hbm %s1, %s270
          %s272 = sshll.u32 %s265, 4
          %s273 = int_to_ptr.vmem [resolvable:$true] %s272
          %278 = dma.hbm_to_vmem [thread:$0]  %s271, 4096, %s273, %s262, 768, 256, 16
        $region36: #{edge_layer_forward.1} parent=27 // pred_fallthru
          _
        // Predicated region
        $region37: #{edge_layer_forward.1} parent=27 // pred_check
          %p279 = pneg %p93
        $region38: #{edge_layer_forward.1} parent=27 // pred_check_branch
          %281 = sbr.rel (%p279) target = $region40
        $region39: #{edge_layer_forward.1} parent=27 // pred_region
          %s282 = sand.u32 %s21, 1
          %s283 = scalar_lea.sflag [#allocation9], %s282
          %s284 = sand.u32 %s83, 1
          %s285 = smul.addr %s284, 2
          %s286 = scalar_lea.vmem [#allocation10], %s285
          %s287 = smul.u32 2, %s21
          %s289 = ssub.s32 32, 32
          %290 = vsyncadd %s283, %s289
          %s291 = smul.addr %s287, 16
          %s292 = scalar_lea.hbm %s2, %s291
          %s294 = sshll.u32 %s286, 4
          %s295 = int_to_ptr.vmem [resolvable:$true] %s294
          %297 = dma.hbm_to_vmem [thread:$0]  %s292, 32, %s295, %s283
        $region40: #{edge_layer_forward.1} parent=27 // pred_fallthru
          _
      $region28: #{edge_layer_forward.1} parent=5 // pred_fallthru
        _
      %p298 = scmp.le.s32.totalorder 1, %s21
      %p299 = scmp.lt.s32.totalorder %s21, 4
      %p300 = pnand %p298, %p299
      %p301 = pneg %p300
      // Predicated region
      $region41: #{edge_layer_forward.1} parent=5 // pred_check
        _
      $region42: #{edge_layer_forward.1} parent=5 // pred_check_branch
        %303 = sbr.rel (%p300) target = $region44
      $region43: #{edge_layer_forward.1} parent=5 // pred_region
        %s304 = ssub.s32 %s21, 1
        %s305 = sand.u32 %s34, 1
        %s306 = scalar_lea.sflag [#allocation6], %s305
        %s307 = sand.u32 %s34, 1
        %s308 = smul.addr %s307, 256
        %s309 = scalar_lea.vmem [#allocation5], %s308
        // Predicated region
        $region45: #{edge_layer_forward.1} parent=43 // pred_check
          %p310 = pneg %p47
        $region46: #{edge_layer_forward.1} parent=43 // pred_check_branch
          %312 = sbr.rel (%p310) target = $region48
        $region47: #{edge_layer_forward.1} parent=43 // pred_region
          %313 = dma.done %s306, 4096
        $region48: #{edge_layer_forward.1} parent=43 // pred_fallthru
          _
        %s314 = sand.u32 %s26, 1
        %s315 = scalar_lea.sflag [#allocation9], %s314
        %s316 = sand.u32 %s60, 1
        %s317 = smul.addr %s316, 256
        %s318 = scalar_lea.vmem [#allocation8], %s317
        // Predicated region
        $region49: #{edge_layer_forward.1} parent=43 // pred_check
          %p319 = pneg %p73
        $region50: #{edge_layer_forward.1} parent=43 // pred_check_branch
          %321 = sbr.rel (%p319) target = $region52
        $region51: #{edge_layer_forward.1} parent=43 // pred_region
          %322 = dma.done %s315, 4096
        $region52: #{edge_layer_forward.1} parent=43 // pred_fallthru
          _
        %s323 = sand.u32 %s26, 1
        %s324 = scalar_lea.sflag [#allocation9], %s323
        %s325 = sand.u32 %s86, 1
        %s326 = smul.addr %s325, 2
        %s327 = scalar_lea.vmem [#allocation10], %s326
        // Predicated region
        $region53: #{edge_layer_forward.1} parent=43 // pred_check
          %p328 = pneg %p99
        $region54: #{edge_layer_forward.1} parent=43 // pred_check_branch
          %330 = sbr.rel (%p328) target = $region56
        $region55: #{edge_layer_forward.1} parent=43 // pred_region
          %331 = dma.done %s324, 32
        $region56: #{edge_layer_forward.1} parent=43 // pred_fallthru
          _
        // Predicated region
        $region57: #{edge_layer_forward.1} parent=43 // pred_check
          %p332 = pneg %p120
        $region58: #{edge_layer_forward.1} parent=43 // pred_check_branch
          %334 = sbr.rel (%p332) target = $region60
        $region59: #{edge_layer_forward.1} parent=43 // pred_region
          %335 = dma.done [#allocation12], 2048
        $region60: #{edge_layer_forward.1} parent=43 // pred_fallthru
          _
        // Predicated region
        $region61: #{edge_layer_forward.1} parent=43 // pred_check
          %p336 = pneg %p141
        $region62: #{edge_layer_forward.1} parent=43 // pred_check_branch
          %338 = sbr.rel (%p336) target = $region64
        $region63: #{edge_layer_forward.1} parent=43 // pred_region
          %339 = dma.done [#allocation12], 16
        $region64: #{edge_layer_forward.1} parent=43 // pred_fallthru
          _
        // Predicated region
        $region65: #{edge_layer_forward.1} parent=43 // pred_check
          %p340 = pneg %p162
        $region66: #{edge_layer_forward.1} parent=43 // pred_check_branch
          %342 = sbr.rel (%p340) target = $region68
        $region67: #{edge_layer_forward.1} parent=43 // pred_region
          %343 = dma.done [#allocation15], 16
        $region68: #{edge_layer_forward.1} parent=43 // pred_fallthru
          _
        %s344 = sand.u32 %s34, 1
        %s345 = scalar_lea.sflag [#allocation6], %s344
        %s346 = sand.u32 %s34, 1
        %s347 = smul.addr %s346, 256
        %s348 = scalar_lea.vmem [#allocation5], %s347
        %p349 = pneg %p47
        %p350 = pneg %p44
        %s351 = sand.u32 %s26, 1
        %s352 = scalar_lea.sflag [#allocation9], %s351
        %s353 = sand.u32 %s60, 1
        %s354 = smul.addr %s353, 256
        %s355 = scalar_lea.vmem [#allocation8], %s354
        %p356 = pneg %p73
        %p357 = pneg %p70
        %s358 = sand.u32 %s26, 1
        %s359 = scalar_lea.sflag [#allocation9], %s358
        %s360 = sand.u32 %s86, 1
        %s361 = smul.addr %s360, 2
        %s362 = scalar_lea.vmem [#allocation10], %s361
        %p363 = pneg %p99
        %p364 = pneg %p96
        %p365 = pneg %p120
        %p366 = pneg %p117
        %p367 = pneg %p141
        %p368 = pneg %p138
        %p369 = pneg %p162
        %p370 = pneg %p159
        %p371 = pneg %p183
        %p372 = pneg %p180
        %s373 = smul.u32 2, %s26
        %s374 = smul.u32 2, %s26
        %s375 = smul.u32 2, %s26
        %p377 = scmp.eq.s32.totalorder %s26, 0
        // Predicated region
        $region69: #{edge_layer_forward.1} parent=43 // pred_check
          %p378 = pneg %p377
        $region70: #{edge_layer_forward.1} parent=43 // pred_check_branch
          %380 = sbr.rel (%p378) target = $region72
        $region71: #{edge_layer_forward.1} parent=43 // pred_region
          %vm381 = vcmask 7168
          %382 = vst.msk [vmem:[#allocation2] sm:$0xff] %vm381, -1e+30
          %383 = vst.msk [vmem:[#allocation2 + $0x8] sm:$0xff] %vm381, -1e+30
          %384 = vst.msk [vmem:[#allocation2 + $0x10] sm:$0xff] %vm381, -1e+30
          %385 = vst.msk [vmem:[#allocation2 + $0x18] sm:$0xff] %vm381, -1e+30
          %386 = vst.msk [vmem:[#allocation2 + $0x20] sm:$0xff] %vm381, -1e+30
          %387 = vst.msk [vmem:[#allocation2 + $0x28] sm:$0xff] %vm381, -1e+30
          %388 = vst.msk [vmem:[#allocation2 + $0x30] sm:$0xff] %vm381, -1e+30
          %389 = vst.msk [vmem:[#allocation2 + $0x38] sm:$0xff] %vm381, -1e+30
          %390 = vst.msk [vmem:[#allocation3] sm:$0xff] %vm381, 0.0
          %391 = vst.msk [vmem:[#allocation3 + $0x8] sm:$0xff] %vm381, 0.0
          %392 = vst.msk [vmem:[#allocation3 + $0x10] sm:$0xff] %vm381, 0.0
          %393 = vst.msk [vmem:[#allocation3 + $0x18] sm:$0xff] %vm381, 0.0
          %394 = vst.msk [vmem:[#allocation3 + $0x20] sm:$0xff] %vm381, 0.0
          %395 = vst.msk [vmem:[#allocation3 + $0x28] sm:$0xff] %vm381, 0.0
          %396 = vst.msk [vmem:[#allocation3 + $0x30] sm:$0xff] %vm381, 0.0
          %397 = vst.msk [vmem:[#allocation3 + $0x38] sm:$0xff] %vm381, 0.0
          %398 = vst [vmem:[#allocation4] sm:$0xff] 0.0
          %399 = vst [vmem:[#allocation4 + $0x8] sm:$0xff] 0.0
          %400 = vst [vmem:[#allocation4 + $0x10] sm:$0xff] 0.0
          %401 = vst [vmem:[#allocation4 + $0x18] sm:$0xff] 0.0
          %402 = vst [vmem:[#allocation4 + $0x20] sm:$0xff] 0.0
          %403 = vst [vmem:[#allocation4 + $0x28] sm:$0xff] 0.0
          %404 = vst [vmem:[#allocation4 + $0x30] sm:$0xff] 0.0
          %405 = vst [vmem:[#allocation4 + $0x38] sm:$0xff] 0.0
        $region72: #{edge_layer_forward.1} parent=43 // pred_fallthru
          _
        %v406 = vld [vmem:[%s309] sm:$0xff]
        %v407 = vld [vmem:[%s309 + $0x8] sm:$0xff]
        %v408 = vld [vmem:[%s309 + $0x10] sm:$0xff]
        %v409 = vld [vmem:[%s309 + $0x18] sm:$0xff]
        %v410 = vld [vmem:[%s309 + $0x20] sm:$0xff]
        %v411 = vld [vmem:[%s309 + $0x28] sm:$0xff]
        %v412 = vld [vmem:[%s309 + $0x30] sm:$0xff]
        %v413 = vld [vmem:[%s309 + $0x38] sm:$0xff]
        %v414 = vld [vmem:[%s309 + $0x40] sm:$0xff]
        %v415 = vld [vmem:[%s309 + $0x48] sm:$0xff]
        %v416 = vld [vmem:[%s309 + $0x50] sm:$0xff]
        %v417 = vld [vmem:[%s309 + $0x58] sm:$0xff]
        %v418 = vld [vmem:[%s309 + $0x60] sm:$0xff]
        %v419 = vld [vmem:[%s309 + $0x68] sm:$0xff]
        %v420 = vld [vmem:[%s309 + $0x70] sm:$0xff]
        %v421 = vld [vmem:[%s309 + $0x78] sm:$0xff]
        %v422 = vld [vmem:[%s309 + $0x80] sm:$0xff]
        %v423 = vld [vmem:[%s309 + $0x88] sm:$0xff]
        %v424 = vld [vmem:[%s309 + $0x90] sm:$0xff]
        %v425 = vld [vmem:[%s309 + $0x98] sm:$0xff]
        %v426 = vld [vmem:[%s309 + $0xa0] sm:$0xff]
        %v427 = vld [vmem:[%s309 + $0xa8] sm:$0xff]
        %v428 = vld [vmem:[%s309 + $0xb0] sm:$0xff]
        %v429 = vld [vmem:[%s309 + $0xb8] sm:$0xff]
        %v430 = vld [vmem:[%s309 + $0xc0] sm:$0xff]
        %v431 = vld [vmem:[%s309 + $0xc8] sm:$0xff]
        %v432 = vld [vmem:[%s309 + $0xd0] sm:$0xff]
        %v433 = vld [vmem:[%s309 + $0xd8] sm:$0xff]
        %v434 = vld [vmem:[%s309 + $0xe0] sm:$0xff]
        %v435 = vld [vmem:[%s309 + $0xe8] sm:$0xff]
        %v436 = vld [vmem:[%s309 + $0xf0] sm:$0xff]
        %v437 = vld [vmem:[%s309 + $0xf8] sm:$0xff]
        %v438 = vld [vmem:[%s318] sm:$0xff]
        %v439 = vld [vmem:[%s318 + $0x8] sm:$0xff]
        %v440 = vld [vmem:[%s318 + $0x10] sm:$0xff]
        %v441 = vld [vmem:[%s318 + $0x18] sm:$0xff]
        %v442 = vld [vmem:[%s318 + $0x20] sm:$0xff]
        %v443 = vld [vmem:[%s318 + $0x28] sm:$0xff]
        %v444 = vld [vmem:[%s318 + $0x30] sm:$0xff]
        %v445 = vld [vmem:[%s318 + $0x38] sm:$0xff]
        %v446 = vld [vmem:[%s318 + $0x40] sm:$0xff]
        %v447 = vld [vmem:[%s318 + $0x48] sm:$0xff]
        %v448 = vld [vmem:[%s318 + $0x50] sm:$0xff]
        %v449 = vld [vmem:[%s318 + $0x58] sm:$0xff]
        %v450 = vld [vmem:[%s318 + $0x60] sm:$0xff]
        %v451 = vld [vmem:[%s318 + $0x68] sm:$0xff]
        %v452 = vld [vmem:[%s318 + $0x70] sm:$0xff]
        %v453 = vld [vmem:[%s318 + $0x78] sm:$0xff]
        %v454 = vld [vmem:[%s318 + $0x80] sm:$0xff]
        %v455 = vld [vmem:[%s318 + $0x88] sm:$0xff]
        %v456 = vld [vmem:[%s318 + $0x90] sm:$0xff]
        %v457 = vld [vmem:[%s318 + $0x98] sm:$0xff]
        %v458 = vld [vmem:[%s318 + $0xa0] sm:$0xff]
        %v459 = vld [vmem:[%s318 + $0xa8] sm:$0xff]
        %v460 = vld [vmem:[%s318 + $0xb0] sm:$0xff]
        %v461 = vld [vmem:[%s318 + $0xb8] sm:$0xff]
        %v462 = vld [vmem:[%s318 + $0xc0] sm:$0xff]
        %v463 = vld [vmem:[%s318 + $0xc8] sm:$0xff]
        %v464 = vld [vmem:[%s318 + $0xd0] sm:$0xff]
        %v465 = vld [vmem:[%s318 + $0xd8] sm:$0xff]
        %v466 = vld [vmem:[%s318 + $0xe0] sm:$0xff]
        %v467 = vld [vmem:[%s318 + $0xe8] sm:$0xff]
        %v468 = vld [vmem:[%s318 + $0xf0] sm:$0xff]
        %v469 = vld [vmem:[%s318 + $0xf8] sm:$0xff]
        %v470 = vld [vmem:[%s327] sm:$0x3]
        %v471 = vmul.f32 %v406, %v438
        %v472 = vmul.f32 %v407, %v439
        %v473 = vmul.f32 %v408, %v440
        %v474 = vmul.f32 %v409, %v441
        %v475 = vmul.f32 %v410, %v442
        %v476 = vmul.f32 %v411, %v443
        %v477 = vmul.f32 %v412, %v444
        %v478 = vmul.f32 %v413, %v445
        %v479 = vmul.f32 %v414, %v446
        %v480 = vmul.f32 %v415, %v447
        %v481 = vmul.f32 %v416, %v448
        %v482 = vmul.f32 %v417, %v449
        %v483 = vmul.f32 %v418, %v450
        %v484 = vmul.f32 %v419, %v451
        %v485 = vmul.f32 %v420, %v452
        %v486 = vmul.f32 %v421, %v453
        %v487 = vmul.f32 %v422, %v454
        %v488 = vmul.f32 %v423, %v455
        %v489 = vmul.f32 %v424, %v456
        %v490 = vmul.f32 %v425, %v457
        %v491 = vmul.f32 %v426, %v458
        %v492 = vmul.f32 %v427, %v459
        %v493 = vmul.f32 %v428, %v460
        %v494 = vmul.f32 %v429, %v461
        %v495 = vmul.f32 %v430, %v462
        %v496 = vmul.f32 %v431, %v463
        %v497 = vmul.f32 %v432, %v464
        %v498 = vmul.f32 %v433, %v465
        %v499 = vmul.f32 %v434, %v466
        %v500 = vmul.f32 %v435, %v467
        %v501 = vmul.f32 %v436, %v468
        %v502 = vmul.f32 %v437, %v469
        %v503 = vadd.f32 %v471, %v473
        %v504 = vadd.f32 %v503, %v475
        %v505 = vadd.f32 %v504, %v477
        %v506 = vadd.f32 %v505, %v479
        %v507 = vadd.f32 %v506, %v481
        %v508 = vadd.f32 %v507, %v483
        %v509 = vadd.f32 %v508, %v485
        %v510 = vadd.f32 %v509, %v487
        %v511 = vadd.f32 %v510, %v489
        %v512 = vadd.f32 %v511, %v491
        %v513 = vadd.f32 %v512, %v493
        %v514 = vadd.f32 %v513, %v495
        %v515 = vadd.f32 %v514, %v497
        %v516 = vadd.f32 %v515, %v499
        %v517 = vadd.f32 %v516, %v501
        %v518 = vrot.slane %v517, 4
        %v519 = vadd.f32 %v517, %v518
        %v520 = vrot.slane %v519, 2
        %v521 = vadd.f32 %v519, %v520
        %v522 = vrot.slane %v521, 1
        %v523 = vadd.f32 %v521, %v522
        %v524 = vadd.f32 %v472, %v474
        %v525 = vadd.f32 %v524, %v476
        %v526 = vadd.f32 %v525, %v478
        %v527 = vadd.f32 %v526, %v480
        %v528 = vadd.f32 %v527, %v482
        %v529 = vadd.f32 %v528, %v484
        %v530 = vadd.f32 %v529, %v486
        %v531 = vadd.f32 %v530, %v488
        %v532 = vadd.f32 %v531, %v490
        %v533 = vadd.f32 %v532, %v492
        %v534 = vadd.f32 %v533, %v494
        %v535 = vadd.f32 %v534, %v496
        %v536 = vadd.f32 %v535, %v498
        %v537 = vadd.f32 %v536, %v500
        %v538 = vadd.f32 %v537, %v502
        %v539 = vrot.slane %v538, 4
        %v540 = vadd.f32 %v538, %v539
        %v541 = vrot.slane %v540, 2
        %v542 = vadd.f32 %v540, %v541
        %v543 = vrot.slane %v542, 1
        %v544 = vadd.f32 %v542, %v543
        %v545 = vlaneseq
        %v546 = vshrl.u32 %v545, 7
        %v547 = vadd.s32 %v546, 8
        %v548 = vadd.s32 %v546, 16
        %v549 = vadd.s32 %v546, 24
        %v550 = vadd.s32 %v546, 32
        %v551 = vadd.s32 %v546, 40
        %v552 = vadd.s32 %v546, 48
        %v553 = vadd.s32 %v546, 56
        %v554 = vlaneseq
        %v555 = vshrl.u32 %v554, 7
        %v556 = vsub.s32 0, %v555
        %v557 = vrot.slane %v470, %v556
        %v558 = vlaneseq
        %v559 = vshrl.u32 %v558, 7
        %v560 = vsub.s32 1, %v559
        %v561 = vrot.slane %v470, %v560
        %vm562 = vcmp.eq.s32.totalorder %v546, %v557
        %vm563 = vcmp.eq.s32.totalorder %v546, %v561
        %vm564 = vcmp.eq.s32.totalorder %v547, %v557
        %vm565 = vcmp.eq.s32.totalorder %v547, %v561
        %vm566 = vcmp.eq.s32.totalorder %v548, %v557
        %vm567 = vcmp.eq.s32.totalorder %v548, %v561
        %vm568 = vcmp.eq.s32.totalorder %v549, %v557
        %vm569 = vcmp.eq.s32.totalorder %v549, %v561
        %vm570 = vcmp.eq.s32.totalorder %v550, %v557
        %vm571 = vcmp.eq.s32.totalorder %v550, %v561
        %vm572 = vcmp.eq.s32.totalorder %v551, %v557
        %vm573 = vcmp.eq.s32.totalorder %v551, %v561
        %vm574 = vcmp.eq.s32.totalorder %v552, %v557
        %vm575 = vcmp.eq.s32.totalorder %v552, %v561
        %vm576 = vcmp.eq.s32.totalorder %v553, %v557
        %vm577 = vcmp.eq.s32.totalorder %v553, %v561
        %v578 = vsel %vm562, %v523, -inf
        %v579 = vsel %vm563, %v544, -inf
        %v580 = vsel %vm564, %v523, -inf
        %v581 = vsel %vm565, %v544, -inf
        %v582 = vsel %vm566, %v523, -inf
        %v583 = vsel %vm567, %v544, -inf
        %v584 = vsel %vm568, %v523, -inf
        %v585 = vsel %vm569, %v544, -inf
        %v586 = vsel %vm570, %v523, -inf
        %v587 = vsel %vm571, %v544, -inf
        %v588 = vsel %vm572, %v523, -inf
        %v589 = vsel %vm573, %v544, -inf
        %v590 = vsel %vm574, %v523, -inf
        %v591 = vsel %vm575, %v544, -inf
        %v592 = vsel %vm576, %v523, -inf
        %v593 = vsel %vm577, %v544, -inf
        %v594 = vld [vmem:[#allocation2] sm:$0xff]
        %v595 = vld [vmem:[#allocation2 + $0x8] sm:$0xff]
        %v596 = vld [vmem:[#allocation2 + $0x10] sm:$0xff]
        %v597 = vld [vmem:[#allocation2 + $0x18] sm:$0xff]
        %v598 = vld [vmem:[#allocation2 + $0x20] sm:$0xff]
        %v599 = vld [vmem:[#allocation2 + $0x28] sm:$0xff]
        %v600 = vld [vmem:[#allocation2 + $0x30] sm:$0xff]
        %v601 = vld [vmem:[#allocation2 + $0x38] sm:$0xff]
        %v602 = vmax.f32 %v578, %v579
        %603 = vmax.xlane.f32.xlu0 %v602
        %v604 = vpop.xlane.xlu0 %603
        %v605 = vmax.f32 %v580, %v581
        %606 = vmax.xlane.f32.xlu0 %v605
        %v607 = vpop.xlane.xlu0 %606
        %v608 = vmax.f32 %v582, %v583
        %609 = vmax.xlane.f32.xlu0 %v608
        %v610 = vpop.xlane.xlu0 %609
        %v611 = vmax.f32 %v584, %v585
        %612 = vmax.xlane.f32.xlu0 %v611
        %v613 = vpop.xlane.xlu0 %612
        %v614 = vmax.f32 %v586, %v587
        %615 = vmax.xlane.f32.xlu0 %v614
        %v616 = vpop.xlane.xlu0 %615
        %v617 = vmax.f32 %v588, %v589
        %618 = vmax.xlane.f32.xlu0 %v617
        %v619 = vpop.xlane.xlu0 %618
        %v620 = vmax.f32 %v590, %v591
        %621 = vmax.xlane.f32.xlu0 %v620
        %v622 = vpop.xlane.xlu0 %621
        %v623 = vmax.f32 %v592, %v593
        %624 = vmax.xlane.f32.xlu0 %v623
        %v625 = vpop.xlane.xlu0 %624
        %v626 = vmax.f32 %v594, %v604
        %v627 = vmax.f32 %v595, %v607
        %v628 = vmax.f32 %v596, %v610
        %v629 = vmax.f32 %v597, %v613
        %v630 = vmax.f32 %v598, %v616
        %v631 = vmax.f32 %v599, %v619
        %v632 = vmax.f32 %v600, %v622
        %v633 = vmax.f32 %v601, %v625
        %v634 = vsub.f32 %v594, %v626
        %v635 = vsub.f32 %v595, %v627
        %v636 = vsub.f32 %v596, %v628
        %v637 = vsub.f32 %v597, %v629
        %v638 = vsub.f32 %v598, %v630
        %v639 = vsub.f32 %v599, %v631
        %v640 = vsub.f32 %v600, %v632
        %v641 = vsub.f32 %v601, %v633
        %v642 = vmul.f32 %v634, 1.442695
        %v643 = vpow.pop %v642
        %v644 = vmul.f32 %v635, 1.442695
        %v645 = vpow.pop %v644
        %v646 = vmul.f32 %v636, 1.442695
        %v647 = vpow.pop %v646
        %v648 = vmul.f32 %v637, 1.442695
        %v649 = vpow.pop %v648
        %v650 = vmul.f32 %v638, 1.442695
        %v651 = vpow.pop %v650
        %v652 = vmul.f32 %v639, 1.442695
        %v653 = vpow.pop %v652
        %v654 = vmul.f32 %v640, 1.442695
        %v655 = vpow.pop %v654
        %v656 = vmul.f32 %v641, 1.442695
        %v657 = vpow.pop %v656
        %659 = vset.pattern.permute.xlu0 0
        %660 = vperm.xlu0 %659, %v626
        %v661 = vpop.permute.xlu0 %660
        %664 = vset.pattern.permute.xlu0 0
        %665 = vperm.xlu0 %664, %v627
        %v666 = vpop.permute.xlu0 %665
        %669 = vset.pattern.permute.xlu0 0
        %670 = vperm.xlu0 %669, %v628
        %v671 = vpop.permute.xlu0 %670
        %674 = vset.pattern.permute.xlu0 0
        %675 = vperm.xlu0 %674, %v629
        %v676 = vpop.permute.xlu0 %675
        %679 = vset.pattern.permute.xlu0 0
        %680 = vperm.xlu0 %679, %v630
        %v681 = vpop.permute.xlu0 %680
        %684 = vset.pattern.permute.xlu0 0
        %685 = vperm.xlu0 %684, %v631
        %v686 = vpop.permute.xlu0 %685
        %689 = vset.pattern.permute.xlu0 0
        %690 = vperm.xlu0 %689, %v632
        %v691 = vpop.permute.xlu0 %690
        %694 = vset.pattern.permute.xlu0 0
        %695 = vperm.xlu0 %694, %v633
        %v696 = vpop.permute.xlu0 %695
        %v698 = vsub.f32 %v578, %v661
        %v699 = vsub.f32 %v579, %v661
        %v700 = vsub.f32 %v580, %v666
        %v701 = vsub.f32 %v581, %v666
        %v702 = vsub.f32 %v582, %v671
        %v703 = vsub.f32 %v583, %v671
        %v704 = vsub.f32 %v584, %v676
        %v705 = vsub.f32 %v585, %v676
        %v706 = vsub.f32 %v586, %v681
        %v707 = vsub.f32 %v587, %v681
        %v708 = vsub.f32 %v588, %v686
        %v709 = vsub.f32 %v589, %v686
        %v710 = vsub.f32 %v590, %v691
        %v711 = vsub.f32 %v591, %v691
        %v712 = vsub.f32 %v592, %v696
        %v713 = vsub.f32 %v593, %v696
        %v714 = vmul.f32 %v698, 1.442695
        %v715 = vpow.pop %v714
        %v716 = vmul.f32 %v699, 1.442695
        %v717 = vpow.pop %v716
        %v718 = vmul.f32 %v700, 1.442695
        %v719 = vpow.pop %v718
        %v720 = vmul.f32 %v701, 1.442695
        %v721 = vpow.pop %v720
        %v722 = vmul.f32 %v702, 1.442695
        %v723 = vpow.pop %v722
        %v724 = vmul.f32 %v703, 1.442695
        %v725 = vpow.pop %v724
        %v726 = vmul.f32 %v704, 1.442695
        %v727 = vpow.pop %v726
        %v728 = vmul.f32 %v705, 1.442695
        %v729 = vpow.pop %v728
        %v730 = vmul.f32 %v706, 1.442695
        %v731 = vpow.pop %v730
        %v732 = vmul.f32 %v707, 1.442695
        %v733 = vpow.pop %v732
        %v734 = vmul.f32 %v708, 1.442695
        %v735 = vpow.pop %v734
        %v736 = vmul.f32 %v709, 1.442695
        %v737 = vpow.pop %v736
        %v738 = vmul.f32 %v710, 1.442695
        %v739 = vpow.pop %v738
        %v740 = vmul.f32 %v711, 1.442695
        %v741 = vpow.pop %v740
        %v742 = vmul.f32 %v712, 1.442695
        %v743 = vpow.pop %v742
        %v744 = vmul.f32 %v713, 1.442695
        %v745 = vpow.pop %v744
        %v746 = vld [vmem:[#allocation3] sm:$0xff]
        %v747 = vld [vmem:[#allocation3 + $0x8] sm:$0xff]
        %v748 = vld [vmem:[#allocation3 + $0x10] sm:$0xff]
        %v749 = vld [vmem:[#allocation3 + $0x18] sm:$0xff]
        %v750 = vld [vmem:[#allocation3 + $0x20] sm:$0xff]
        %v751 = vld [vmem:[#allocation3 + $0x28] sm:$0xff]
        %v752 = vld [vmem:[#allocation3 + $0x30] sm:$0xff]
        %v753 = vld [vmem:[#allocation3 + $0x38] sm:$0xff]
        %v754 = vmul.f32 %v643, %v746
        %v755 = vmul.f32 %v645, %v747
        %v756 = vmul.f32 %v647, %v748
        %v757 = vmul.f32 %v649, %v749
        %v758 = vmul.f32 %v651, %v750
        %v759 = vmul.f32 %v653, %v751
        %v760 = vmul.f32 %v655, %v752
        %v761 = vmul.f32 %v657, %v753
        %v762 = vadd.f32 %v715, %v717
        %763 = vadd.xlane.f32.xlu0 %v762
        %v764 = vpop.xlane.xlu0 %763
        %v765 = vadd.f32 %v719, %v721
        %766 = vadd.xlane.f32.xlu0 %v765
        %v767 = vpop.xlane.xlu0 %766
        %v768 = vadd.f32 %v723, %v725
        %769 = vadd.xlane.f32.xlu0 %v768
        %v770 = vpop.xlane.xlu0 %769
        %v771 = vadd.f32 %v727, %v729
        %772 = vadd.xlane.f32.xlu0 %v771
        %v773 = vpop.xlane.xlu0 %772
        %v774 = vadd.f32 %v731, %v733
        %775 = vadd.xlane.f32.xlu0 %v774
        %v776 = vpop.xlane.xlu0 %775
        %v777 = vadd.f32 %v735, %v737
        %778 = vadd.xlane.f32.xlu0 %v777
        %v779 = vpop.xlane.xlu0 %778
        %v780 = vadd.f32 %v739, %v741
        %781 = vadd.xlane.f32.xlu0 %v780
        %v782 = vpop.xlane.xlu0 %781
        %v783 = vadd.f32 %v743, %v745
        %784 = vadd.xlane.f32.xlu0 %v783
        %v785 = vpop.xlane.xlu0 %784
        %v786 = vadd.f32 %v754, %v764
        %v787 = vadd.f32 %v755, %v767
        %v788 = vadd.f32 %v756, %v770
        %v789 = vadd.f32 %v757, %v773
        %v790 = vadd.f32 %v758, %v776
        %v791 = vadd.f32 %v759, %v779
        %v792 = vadd.f32 %v760, %v782
        %v793 = vadd.f32 %v761, %v785
        %vm794 = vcmask 7168
        %795 = vst.msk [vmem:[#allocation3] sm:$0xff] %vm794, %v786
        %796 = vst.msk [vmem:[#allocation3 + $0x8] sm:$0xff] %vm794, %v787
        %797 = vst.msk [vmem:[#allocation3 + $0x10] sm:$0xff] %vm794, %v788
        %798 = vst.msk [vmem:[#allocation3 + $0x18] sm:$0xff] %vm794, %v789
        %799 = vst.msk [vmem:[#allocation3 + $0x20] sm:$0xff] %vm794, %v790
        %800 = vst.msk [vmem:[#allocation3 + $0x28] sm:$0xff] %vm794, %v791
        %801 = vst.msk [vmem:[#allocation3 + $0x30] sm:$0xff] %vm794, %v792
        %802 = vst.msk [vmem:[#allocation3 + $0x38] sm:$0xff] %vm794, %v793
        %v803 = vpack.c.bf16 %v719, %v715
        %v804 = vpack.c.bf16 %v721, %v717
        %v805 = vpack.c.bf16 %v727, %v723
        %v806 = vpack.c.bf16 %v729, %v725
        %v807 = vpack.c.bf16 %v735, %v731
        %v808 = vpack.c.bf16 %v737, %v733
        %v809 = vpack.c.bf16 %v743, %v739
        %v810 = vpack.c.bf16 %v745, %v741
        %v811 = vpack.c.bf16 %v408, %v406
        %v812 = vpack.c.bf16 %v409, %v407
        %v813 = vpack.c.bf16 %v412, %v410
        %v814 = vpack.c.bf16 %v413, %v411
        %v815 = vpack.c.bf16 %v416, %v414
        %v816 = vpack.c.bf16 %v417, %v415
        %v817 = vpack.c.bf16 %v420, %v418
        %v818 = vpack.c.bf16 %v421, %v419
        %v819 = vpack.c.bf16 %v424, %v422
        %v820 = vpack.c.bf16 %v425, %v423
        %v821 = vpack.c.bf16 %v428, %v426
        %v822 = vpack.c.bf16 %v429, %v427
        %v823 = vpack.c.bf16 %v432, %v430
        %v824 = vpack.c.bf16 %v433, %v431
        %v825 = vpack.c.bf16 %v436, %v434
        %v826 = vpack.c.bf16 %v437, %v435
        %827 = vmatprep.subr.bf16.mxu0 %v812
        %828 = vmatpush1.bf16.xpose.msra.mxu0 %v811
        %829 = vmatprep.subr.bf16.mxu0 %v814
        %830 = vmatpush1.bf16.xpose.msra.mxu0 %v813
        %831 = vmatprep.subr.bf16.mxu0 %v816
        %832 = vmatpush1.bf16.xpose.msra.mxu0 %v815
        %833 = vmatprep.subr.bf16.mxu0 %v818
        %834 = vmatpush1.bf16.xpose.msra.mxu0 %v817
        %835 = vmatprep.subr.bf16.mxu0 %v820
        %836 = vmatpush1.bf16.xpose.msra.mxu0 %v819
        %837 = vmatprep.subr.bf16.mxu0 %v822
        %838 = vmatpush1.bf16.xpose.msra.mxu0 %v821
        %839 = vmatprep.subr.bf16.mxu0 %v824
        %840 = vmatpush1.bf16.xpose.msra.mxu0 %v823
        %841 = vmatprep.subr.bf16.mxu0 %v826
        %842 = vmatpush1.bf16.xpose.msra.mxu0 %v825
        %843 = vmatprep.subr.bf16.mxu0 0
        %844 = vmatpush1.bf16.xpose.msra.mxu0 0
        %845 = vmatprep.subr.bf16.mxu0 0
        %846 = vmatpush1.bf16.xpose.msra.mxu0 0
        %847 = vmatprep.subr.bf16.mxu0 0
        %848 = vmatpush1.bf16.xpose.msra.mxu0 0
        %849 = vmatprep.subr.bf16.mxu0 0
        %850 = vmatpush1.bf16.xpose.msra.mxu0 0
        %851 = vmatprep.subr.bf16.mxu0 0
        %852 = vmatpush1.bf16.xpose.msra.mxu0 0
        %853 = vmatprep.subr.bf16.mxu0 0
        %854 = vmatpush1.bf16.xpose.msra.mxu0 0
        %855 = vmatprep.subr.bf16.mxu0 0
        %856 = vmatpush1.bf16.xpose.msra.mxu0 0
        %857 = vmatprep.subr.bf16.mxu0 0
        %858 = vmatpush1.bf16.xpose.msra.mxu0 0
        %859 = vmatprep.mubr.bf16.mxu0 %v804
        %860 = vmatmul.mubr.bf16.gmra.mrb[0].mxu0 %v803
        %v861 = vpop.f32.mrb[0].mxu0
        %v862 = vadd.f32 0.0, %v861
        %v863 = vpop.f32.mrb[0].mxu0
        %v864 = vpop.f32.mrb[0].mxu0
        %v865 = vadd.f32 0.0, %v864
        %v866 = vpop.f32.mrb[0].mxu0
        %867 = vmatprep.mubr.bf16.mxu0 %v806
        %868 = vmatmul.mubr.bf16.gmra.mrb[0].mxu0 %v805
        %v869 = vpop.f32.mrb[0].mxu0
        %v870 = vadd.f32 0.0, %v869
        %v871 = vpop.f32.mrb[0].mxu0
        %v872 = vpop.f32.mrb[0].mxu0
        %v873 = vadd.f32 0.0, %v872
        %v874 = vpop.f32.mrb[0].mxu0
        %875 = vmatprep.mubr.bf16.mxu0 %v808
        %876 = vmatmul.mubr.bf16.gmra.mrb[0].mxu0 %v807
        %v877 = vpop.f32.mrb[0].mxu0
        %v878 = vadd.f32 0.0, %v877
        %v879 = vpop.f32.mrb[0].mxu0
        %v880 = vpop.f32.mrb[0].mxu0
        %v881 = vadd.f32 0.0, %v880
        %v882 = vpop.f32.mrb[0].mxu0
        %883 = vmatprep.mubr.bf16.mxu0 %v810
        %884 = vmatmul.mubr.bf16.gmra.mrb[0].mxu0 %v809
        %v885 = vpop.f32.mrb[0].mxu0
        %v886 = vadd.f32 0.0, %v885
        %v887 = vpop.f32.mrb[0].mxu0
        %v888 = vpop.f32.mrb[0].mxu0
        %v889 = vadd.f32 0.0, %v888
        %v890 = vpop.f32.mrb[0].mxu0
        %891 = vdwg.mxu0
        %v892 = vld [vmem:[#allocation4] sm:$0xff]
        %v893 = vld [vmem:[#allocation4 + $0x8] sm:$0xff]
        %v894 = vld [vmem:[#allocation4 + $0x10] sm:$0xff]
        %v895 = vld [vmem:[#allocation4 + $0x18] sm:$0xff]
        %v896 = vld [vmem:[#allocation4 + $0x20] sm:$0xff]
        %v897 = vld [vmem:[#allocation4 + $0x28] sm:$0xff]
        %v898 = vld [vmem:[#allocation4 + $0x30] sm:$0xff]
        %v899 = vld [vmem:[#allocation4 + $0x38] sm:$0xff]
        %901 = vset.pattern.permute.xlu0 0
        %902 = vperm.xlu0 %901, %v643
        %v903 = vpop.permute.xlu0 %902
        %906 = vset.pattern.permute.xlu0 0
        %907 = vperm.xlu0 %906, %v645
        %v908 = vpop.permute.xlu0 %907
        %911 = vset.pattern.permute.xlu0 0
        %912 = vperm.xlu0 %911, %v647
        %v913 = vpop.permute.xlu0 %912
        %916 = vset.pattern.permute.xlu0 0
        %917 = vperm.xlu0 %916, %v649
        %v918 = vpop.permute.xlu0 %917
        %921 = vset.pattern.permute.xlu0 0
        %922 = vperm.xlu0 %921, %v651
        %v923 = vpop.permute.xlu0 %922
        %926 = vset.pattern.permute.xlu0 0
        %927 = vperm.xlu0 %926, %v653
        %v928 = vpop.permute.xlu0 %927
        %931 = vset.pattern.permute.xlu0 0
        %932 = vperm.xlu0 %931, %v655
        %v933 = vpop.permute.xlu0 %932
        %936 = vset.pattern.permute.xlu0 0
        %937 = vperm.xlu0 %936, %v657
        %v938 = vpop.permute.xlu0 %937
        %v940 = vmul.f32 %v903, %v892
        %v941 = vmul.f32 %v908, %v893
        %v942 = vmul.f32 %v913, %v894
        %v943 = vmul.f32 %v918, %v895
        %v944 = vmul.f32 %v923, %v896
        %v945 = vmul.f32 %v928, %v897
        %v946 = vmul.f32 %v933, %v898
        %v947 = vmul.f32 %v938, %v899
        %v948 = vadd.f32 %v940, %v862
        %v949 = vadd.f32 %v941, %v865
        %v950 = vadd.f32 %v942, %v870
        %v951 = vadd.f32 %v943, %v873
        %v952 = vadd.f32 %v944, %v878
        %v953 = vadd.f32 %v945, %v881
        %v954 = vadd.f32 %v946, %v886
        %v955 = vadd.f32 %v947, %v889
        %956 = vst [vmem:[#allocation4] sm:$0xff] %v948
        %957 = vst [vmem:[#allocation4 + $0x8] sm:$0xff] %v949
        %958 = vst [vmem:[#allocation4 + $0x10] sm:$0xff] %v950
        %959 = vst [vmem:[#allocation4 + $0x18] sm:$0xff] %v951
        %960 = vst [vmem:[#allocation4 + $0x20] sm:$0xff] %v952
        %961 = vst [vmem:[#allocation4 + $0x28] sm:$0xff] %v953
        %962 = vst [vmem:[#allocation4 + $0x30] sm:$0xff] %v954
        %963 = vst [vmem:[#allocation4 + $0x38] sm:$0xff] %v955
        %964 = vst.msk [vmem:[#allocation2] sm:$0xff] %vm794, %v626
        %965 = vst.msk [vmem:[#allocation2 + $0x8] sm:$0xff] %vm794, %v627
        %966 = vst.msk [vmem:[#allocation2 + $0x10] sm:$0xff] %vm794, %v628
        %967 = vst.msk [vmem:[#allocation2 + $0x18] sm:$0xff] %vm794, %v629
        %968 = vst.msk [vmem:[#allocation2 + $0x20] sm:$0xff] %vm794, %v630
        %969 = vst.msk [vmem:[#allocation2 + $0x28] sm:$0xff] %vm794, %v631
        %970 = vst.msk [vmem:[#allocation2 + $0x30] sm:$0xff] %vm794, %v632
        %971 = vst.msk [vmem:[#allocation2 + $0x38] sm:$0xff] %vm794, %v633
        %p972 = scmp.eq.s32.totalorder %s26, 2
        // Predicated region
        $region73: #{edge_layer_forward.1} parent=43 // pred_check
          %p973 = pneg %p972
        $region74: #{edge_layer_forward.1} parent=43 // pred_check_branch
          %975 = sbr.rel (%p973) target = $region76
        $region75: #{edge_layer_forward.1} parent=43 // pred_region
          %v976 = vld [vmem:[#allocation3] sm:$0xff]
          %v977 = vld [vmem:[#allocation3 + $0x8] sm:$0xff]
          %v978 = vld [vmem:[#allocation3 + $0x10] sm:$0xff]
          %v979 = vld [vmem:[#allocation3 + $0x18] sm:$0xff]
          %v980 = vld [vmem:[#allocation3 + $0x20] sm:$0xff]
          %v981 = vld [vmem:[#allocation3 + $0x28] sm:$0xff]
          %v982 = vld [vmem:[#allocation3 + $0x30] sm:$0xff]
          %v983 = vld [vmem:[#allocation3 + $0x38] sm:$0xff]
          %vm984 = vcmp.gt.f32.partialorder %v976, 0.0
          %vm985 = vcmp.gt.f32.partialorder %v977, 0.0
          %vm986 = vcmp.gt.f32.partialorder %v978, 0.0
          %vm987 = vcmp.gt.f32.partialorder %v979, 0.0
          %vm988 = vcmp.gt.f32.partialorder %v980, 0.0
          %vm989 = vcmp.gt.f32.partialorder %v981, 0.0
          %vm990 = vcmp.gt.f32.partialorder %v982, 0.0
          %vm991 = vcmp.gt.f32.partialorder %v983, 0.0
          %v992 = vrcp.pop %v976
          %v993 = vmul.f32 1.0, %v992
          %v994 = vrcp.pop %v977
          %v995 = vmul.f32 1.0, %v994
          %v996 = vrcp.pop %v978
          %v997 = vmul.f32 1.0, %v996
          %v998 = vrcp.pop %v979
          %v999 = vmul.f32 1.0, %v998
          %v1000 = vrcp.pop %v980
          %v1001 = vmul.f32 1.0, %v1000
          %v1002 = vrcp.pop %v981
          %v1003 = vmul.f32 1.0, %v1002
          %v1004 = vrcp.pop %v982
          %v1005 = vmul.f32 1.0, %v1004
          %v1006 = vrcp.pop %v983
          %v1007 = vmul.f32 1.0, %v1006
          %v1008 = vsel %vm984, %v993, 0.0
          %v1009 = vsel %vm985, %v995, 0.0
          %v1010 = vsel %vm986, %v997, 0.0
          %v1011 = vsel %vm987, %v999, 0.0
          %v1012 = vsel %vm988, %v1001, 0.0
          %v1013 = vsel %vm989, %v1003, 0.0
          %v1014 = vsel %vm990, %v1005, 0.0
          %v1015 = vsel %vm991, %v1007, 0.0
          %v1016 = vld [vmem:[#allocation4] sm:$0xff]
          %v1017 = vld [vmem:[#allocation4 + $0x8] sm:$0xff]
          %v1018 = vld [vmem:[#allocation4 + $0x10] sm:$0xff]
          %v1019 = vld [vmem:[#allocation4 + $0x18] sm:$0xff]
          %v1020 = vld [vmem:[#allocation4 + $0x20] sm:$0xff]
          %v1021 = vld [vmem:[#allocation4 + $0x28] sm:$0xff]
          %v1022 = vld [vmem:[#allocation4 + $0x30] sm:$0xff]
          %v1023 = vld [vmem:[#allocation4 + $0x38] sm:$0xff]
          %1025 = vset.pattern.permute.xlu0 0
          %1026 = vperm.xlu0 %1025, %v1008
          %v1027 = vpop.permute.xlu0 %1026
          %1030 = vset.pattern.permute.xlu0 0
          %1031 = vperm.xlu0 %1030, %v1009
          %v1032 = vpop.permute.xlu0 %1031
          %1035 = vset.pattern.permute.xlu0 0
          %1036 = vperm.xlu0 %1035, %v1010
          %v1037 = vpop.permute.xlu0 %1036
          %1040 = vset.pattern.permute.xlu0 0
          %1041 = vperm.xlu0 %1040, %v1011
          %v1042 = vpop.permute.xlu0 %1041
          %1045 = vset.pattern.permute.xlu0 0
          %1046 = vperm.xlu0 %1045, %v1012
          %v1047 = vpop.permute.xlu0 %1046
          %1050 = vset.pattern.permute.xlu0 0
          %1051 = vperm.xlu0 %1050, %v1013
          %v1052 = vpop.permute.xlu0 %1051
          %1055 = vset.pattern.permute.xlu0 0
          %1056 = vperm.xlu0 %1055, %v1014
          %v1057 = vpop.permute.xlu0 %1056
          %1060 = vset.pattern.permute.xlu0 0
          %1061 = vperm.xlu0 %1060, %v1015
          %v1062 = vpop.permute.xlu0 %1061
          %v1064 = vmul.f32 %v1016, %v1027
          %v1065 = vmul.f32 %v1017, %v1032
          %v1066 = vmul.f32 %v1018, %v1037
          %v1067 = vmul.f32 %v1019, %v1042
          %v1068 = vmul.f32 %v1020, %v1047
          %v1069 = vmul.f32 %v1021, %v1052
          %v1070 = vmul.f32 %v1022, %v1057
          %v1071 = vmul.f32 %v1023, %v1062
          %v1072 = vpack.c.bf16 %v1065, %v1064
          %v1073 = vpack.c.bf16 %v1067, %v1066
          %v1074 = vpack.c.bf16 %v1069, %v1068
          %v1075 = vpack.c.bf16 %v1071, %v1070
          %v1076 = vld [vmem:[#allocation11] sm:$0xff]
          %v1077 = vld [vmem:[#allocation11 + $0x8] sm:$0xff]
          %v1078 = vld [vmem:[#allocation11 + $0x10] sm:$0xff]
          %v1079 = vld [vmem:[#allocation11 + $0x18] sm:$0xff]
          %v1080 = vld [vmem:[#allocation11 + $0x20] sm:$0xff]
          %v1081 = vld [vmem:[#allocation11 + $0x28] sm:$0xff]
          %v1082 = vld [vmem:[#allocation11 + $0x30] sm:$0xff]
          %v1083 = vld [vmem:[#allocation11 + $0x38] sm:$0xff]
          %v1084 = vld [vmem:[#allocation11 + $0x40] sm:$0xff]
          %v1085 = vld [vmem:[#allocation11 + $0x48] sm:$0xff]
          %v1086 = vld [vmem:[#allocation11 + $0x50] sm:$0xff]
          %v1087 = vld [vmem:[#allocation11 + $0x58] sm:$0xff]
          %v1088 = vld [vmem:[#allocation11 + $0x60] sm:$0xff]
          %v1089 = vld [vmem:[#allocation11 + $0x68] sm:$0xff]
          %v1090 = vld [vmem:[#allocation11 + $0x70] sm:$0xff]
          %v1091 = vld [vmem:[#allocation11 + $0x78] sm:$0xff]
          %v1092 = vpack.c.bf16 %v1077, %v1076
          %v1093 = vpack.c.bf16 %v1079, %v1078
          %v1094 = vpack.c.bf16 %v1081, %v1080
          %v1095 = vpack.c.bf16 %v1083, %v1082
          %v1096 = vpack.c.bf16 %v1085, %v1084
          %v1097 = vpack.c.bf16 %v1087, %v1086
          %v1098 = vpack.c.bf16 %v1089, %v1088
          %v1099 = vpack.c.bf16 %v1091, %v1090
          %1100 = vmatprep.subr.bf16.mxu0 0
          %1101 = vmatpush1.bf16.msra.mxu0 %v1092
          %1102 = vmatprep.subr.bf16.mxu0 0
          %1103 = vmatpush1.bf16.msra.mxu0 %v1093
          %1104 = vmatprep.subr.bf16.mxu0 0
          %1105 = vmatpush1.bf16.msra.mxu0 %v1094
          %1106 = vmatprep.subr.bf16.mxu0 0
          %1107 = vmatpush1.bf16.msra.mxu0 %v1095
          %1108 = vmatprep.subr.bf16.mxu0 0
          %1109 = vmatpush1.bf16.msra.mxu0 %v1096
          %1110 = vmatprep.subr.bf16.mxu0 0
          %1111 = vmatpush1.bf16.msra.mxu0 %v1097
          %1112 = vmatprep.subr.bf16.mxu0 0
          %1113 = vmatpush1.bf16.msra.mxu0 %v1098
          %1114 = vmatprep.subr.bf16.mxu0 0
          %1115 = vmatpush1.bf16.msra.mxu0 %v1099
          %1116 = vmatprep.subr.bf16.mxu0 0
          %1117 = vmatpush1.bf16.msra.mxu0 0
          %1118 = vmatprep.subr.bf16.mxu0 0
          %1119 = vmatpush1.bf16.msra.mxu0 0
          %1120 = vmatprep.subr.bf16.mxu0 0
          %1121 = vmatpush1.bf16.msra.mxu0 0
          %1122 = vmatprep.subr.bf16.mxu0 0
          %1123 = vmatpush1.bf16.msra.mxu0 0
          %1124 = vmatprep.subr.bf16.mxu0 0
          %1125 = vmatpush1.bf16.msra.mxu0 0
          %1126 = vmatprep.subr.bf16.mxu0 0
          %1127 = vmatpush1.bf16.msra.mxu0 0
          %1128 = vmatprep.subr.bf16.mxu0 0
          %1129 = vmatpush1.bf16.msra.mxu0 0
          %1130 = vmatprep.subr.bf16.mxu0 0
          %1131 = vmatpush1.bf16.msra.mxu0 0
          %1132 = vmatprep.mubr.bf16.mxu0 0
          %1133 = vmatmul.mubr.bf16.gmra.mrb[0].mxu0 %v1072
          %v1134 = vpop.f32.mrb[0].mxu0
          %v1135 = vadd.f32 0.0, %v1134
          %v1136 = vpop.f32.mrb[0].mxu0
          %v1137 = vpop.f32.mrb[0].mxu0
          %v1138 = vadd.f32 0.0, %v1137
          %v1139 = vpop.f32.mrb[0].mxu0
          %1140 = vmatprep.mubr.bf16.mxu0 0
          %1141 = vmatmul.mubr.bf16.gmra.mrb[0].mxu0 %v1073
          %v1142 = vpop.f32.mrb[0].mxu0
          %v1143 = vadd.f32 0.0, %v1142
          %v1144 = vpop.f32.mrb[0].mxu0
          %v1145 = vpop.f32.mrb[0].mxu0
          %v1146 = vadd.f32 0.0, %v1145
          %v1147 = vpop.f32.mrb[0].mxu0
          %1148 = vmatprep.mubr.bf16.mxu0 0
          %1149 = vmatmul.mubr.bf16.gmra.mrb[0].mxu0 %v1074
          %v1150 = vpop.f32.mrb[0].mxu0
          %v1151 = vadd.f32 0.0, %v1150
          %v1152 = vpop.f32.mrb[0].mxu0
          %v1153 = vpop.f32.mrb[0].mxu0
          %v1154 = vadd.f32 0.0, %v1153
          %v1155 = vpop.f32.mrb[0].mxu0
          %1156 = vmatprep.mubr.bf16.mxu0 0
          %1157 = vmatmul.mubr.bf16.gmra.mrb[0].mxu0 %v1075
          %v1158 = vpop.f32.mrb[0].mxu0
          %v1159 = vadd.f32 0.0, %v1158
          %v1160 = vpop.f32.mrb[0].mxu0
          %v1161 = vpop.f32.mrb[0].mxu0
          %v1162 = vadd.f32 0.0, %v1161
          %v1163 = vpop.f32.mrb[0].mxu0
          %1164 = vdwg.mxu0
          %v1165 = vadd.f32 %v1135, %v1138
          %v1166 = vadd.f32 %v1165, %v1143
          %v1167 = vadd.f32 %v1166, %v1146
          %v1168 = vadd.f32 %v1167, %v1151
          %v1169 = vadd.f32 %v1168, %v1154
          %v1170 = vadd.f32 %v1169, %v1159
          %v1171 = vadd.f32 %v1170, %v1162
          %v1172 = vrot.slane %v1171, 4
          %v1173 = vadd.f32 %v1171, %v1172
          %v1174 = vrot.slane %v1173, 2
          %v1175 = vadd.f32 %v1173, %v1174
          %v1176 = vrot.slane %v1175, 1
          %v1177 = vadd.f32 %v1175, %v1176
          %v1178 = vrcp.pop 64.0
          %v1179 = vmul.f32 %v1177, %v1178
          %v1180 = vsub.f32 %v1135, %v1179
          %v1181 = vsub.f32 %v1138, %v1179
          %v1182 = vsub.f32 %v1143, %v1179
          %v1183 = vsub.f32 %v1146, %v1179
          %v1184 = vsub.f32 %v1151, %v1179
          %v1185 = vsub.f32 %v1154, %v1179
          %v1186 = vsub.f32 %v1159, %v1179
          %v1187 = vsub.f32 %v1162, %v1179
          %v1188 = vmul.f32 %v1180, %v1180
          %v1189 = vmul.f32 %v1181, %v1181
          %v1190 = vmul.f32 %v1182, %v1182
          %v1191 = vmul.f32 %v1183, %v1183
          %v1192 = vmul.f32 %v1184, %v1184
          %v1193 = vmul.f32 %v1185, %v1185
          %v1194 = vmul.f32 %v1186, %v1186
          %v1195 = vmul.f32 %v1187, %v1187
          %v1196 = vadd.f32 %v1188, %v1189
          %v1197 = vadd.f32 %v1196, %v1190
          %v1198 = vadd.f32 %v1197, %v1191
          %v1199 = vadd.f32 %v1198, %v1192
          %v1200 = vadd.f32 %v1199, %v1193
          %v1201 = vadd.f32 %v1200, %v1194
          %v1202 = vadd.f32 %v1201, %v1195
          %v1203 = vrot.slane %v1202, 4
          %v1204 = vadd.f32 %v1202, %v1203
          %v1205 = vrot.slane %v1204, 2
          %v1206 = vadd.f32 %v1204, %v1205
          %v1207 = vrot.slane %v1206, 1
          %v1208 = vadd.f32 %v1206, %v1207
          %v1209 = vmul.f32 %v1208, %v1178
          %v1210 = vadd.f32 %v1209, 1e-05
          %v1211 = vrsqrt.pop %v1210
          %v1212 = vmul.f32 %v1180, %v1211
          %v1213 = vmul.f32 %v1181, %v1211
          %v1214 = vmul.f32 %v1182, %v1211
          %v1215 = vmul.f32 %v1183, %v1211
          %v1216 = vmul.f32 %v1184, %v1211
          %v1217 = vmul.f32 %v1185, %v1211
          %v1218 = vmul.f32 %v1186, %v1211
          %v1219 = vmul.f32 %v1187, %v1211
          %v1220 = vld [vmem:[#allocation13] sm:$0x1]
          %v1222 = vlaneseq
          %v1223 = vshrl.u32 %v1222, 7
          %v1224 = vsub.s32 0, %v1223
          %v1225 = vrot.slane %v1220, %v1224
          %v1227 = vmul.f32 %v1212, %v1225
          %v1228 = vmul.f32 %v1213, %v1225
          %v1229 = vmul.f32 %v1214, %v1225
          %v1230 = vmul.f32 %v1215, %v1225
          %v1231 = vmul.f32 %v1216, %v1225
          %v1232 = vmul.f32 %v1217, %v1225
          %v1233 = vmul.f32 %v1218, %v1225
          %v1234 = vmul.f32 %v1219, %v1225
          %v1235 = vld [vmem:[#allocation14] sm:$0x1]
          %v1237 = vlaneseq
          %v1238 = vshrl.u32 %v1237, 7
          %v1239 = vsub.s32 0, %v1238
          %v1240 = vrot.slane %v1235, %v1239
          %v1242 = vadd.f32 %v1227, %v1240
          %v1243 = vadd.f32 %v1228, %v1240
          %v1244 = vadd.f32 %v1229, %v1240
          %v1245 = vadd.f32 %v1230, %v1240
          %v1246 = vadd.f32 %v1231, %v1240
          %v1247 = vadd.f32 %v1232, %v1240
          %v1248 = vadd.f32 %v1233, %v1240
          %v1249 = vadd.f32 %v1234, %v1240
          %v1250 = vtanh.pop %v1242
          %v1251 = vtanh.pop %v1243
          %v1252 = vtanh.pop %v1244
          %v1253 = vtanh.pop %v1245
          %v1254 = vtanh.pop %v1246
          %v1255 = vtanh.pop %v1247
          %v1256 = vtanh.pop %v1248
          %v1257 = vtanh.pop %v1249
          %1258 = vst [vmem:[#allocation16] sm:$0xff] %v1250
          %1259 = vst [vmem:[#allocation16 + $0x8] sm:$0xff] %v1251
          %1260 = vst [vmem:[#allocation16 + $0x10] sm:$0xff] %v1252
          %1261 = vst [vmem:[#allocation16 + $0x18] sm:$0xff] %v1253
          %1262 = vst [vmem:[#allocation16 + $0x20] sm:$0xff] %v1254
          %1263 = vst [vmem:[#allocation16 + $0x28] sm:$0xff] %v1255
          %1264 = vst [vmem:[#allocation16 + $0x30] sm:$0xff] %v1256
          %1265 = vst [vmem:[#allocation16 + $0x38] sm:$0xff] %v1257
        $region76: #{edge_layer_forward.1} parent=43 // pred_fallthru
          _
        // Predicated region
        $region77: #{edge_layer_forward.1} parent=43 // pred_check
          %p1266 = pneg %p180
        $region78: #{edge_layer_forward.1} parent=43 // pred_check_branch
          %1268 = sbr.rel (%p1266) target = $region80
        $region79: #{edge_layer_forward.1} parent=43 // pred_region
          %s1270 = ssub.s32 1024, 1024
          %1271 = vsyncadd [#allocation7], %s1270
          %s1272 = sshll.u32 [#allocation16], 4
          %s1273 = int_to_ptr.vmem [resolvable:$true] %s1272
          %1278 = dma.vmem_to_hbm [thread:$0]  %s1273, 1024, %s6, [#allocation7], 128, 128, 8
        $region80: #{edge_layer_forward.1} parent=43 // pred_fallthru
          _
        // Predicated region
        $region81: #{edge_layer_forward.1} parent=43 // pred_check
          %p1279 = pneg %p180
        $region82: #{edge_layer_forward.1} parent=43 // pred_check_branch
          %1281 = sbr.rel (%p1279) target = $region84
        $region83: #{edge_layer_forward.1} parent=43 // pred_region
          %1282 = dma.done [#allocation7], 1024
        $region84: #{edge_layer_forward.1} parent=43 // pred_fallthru
          _
      $region44: #{edge_layer_forward.1} parent=5 // pred_fallthru
        _
      %p1283 = scmp.le.s32.totalorder 2, %s21
      // Predicated region
      $region85: #{edge_layer_forward.1} parent=5 // pred_check
        %p1284 = pneg %p1283
      $region86: #{edge_layer_forward.1} parent=5 // pred_check_branch
        %1286 = sbr.rel (%p1284) target = $region88
      $region87: #{edge_layer_forward.1} parent=5 // pred_region
        %s1287 = ssub.s32 %s21, 2
      $region88: #{edge_layer_forward.1} parent=5 // pred_fallthru
        _
    $region6: #{edge_layer_forward.1} parent=1 // loop_footer
      %s25 = sadd.s32 1, %s21
    $region7: #{edge_layer_forward.1} parent=1 // loop_footer_branch
      %20 = sbr.rel target = $region3
    $region8: #{edge_layer_forward.1} parent=1 // loop_exit
      _
    %1288 = vsyncpa [#allocation6], 1
    %s1289 = scalar_lea.sflag [#allocation6], 1
    %1290 = vsyncpa %s1289, 1
    %1291 = vsyncpa [#allocation9], 1
    %s1292 = scalar_lea.sflag [#allocation9], 1
    %1293 = vsyncpa %s1292, 1
    %1294 = vsyncpa [#allocation12], 1
    %1295 = vsyncpa [#allocation15], 1
    %1296 = vsyncpa [#allocation7], 1
    %s1297 = scalar_lea.sflag [#allocation7], 1
    %1298 = vsyncpa %s1297, 1

</llo_original>
